<compile_context>
chip_gen: v5e
topology: v5e:2x2
jax: 0.10.0
libtpu: 0.0.40
codegen_flags: <defaults>
</compile_context>

<pallas_src>
import functools
import math

import jax
import jax.numpy as jnp
from jax.experimental import pallas as pl
from jax.experimental.pallas import tpu as pltpu


def _round_up(x, m):
    return ((x + m - 1) // m) * m


def _vmem_cap_bytes():
    """Physical per-core VMEM for the current TPU generation (conservative fallback)."""
    try:
        return int(pltpu.get_tpu_info().vmem_capacity_bytes)
    except Exception:
        return 64 << 20  # v7x per-TC value; safe lower bound for all generations


def _gelu(x):
    # tanh-form GELU: transcendental runs on the EUP slot, ~1e-3 off torch's exact erf.
    return jax.nn.gelu(x, approximate=True)


def _velocity_kernel(n_hidden_layers,
                     emb_ref, x_ref,
                     wt1_ref, bt1_ref, wt2_ref, bt2_ref,
                     w0_ref, b0_ref,
                     *rest):
    # rest = [wh_0, bh_0, ..., wh_{n-1}, bh_{n-1}, w_out, b_out, o_ref]
    hidden_refs = rest[:2 * n_hidden_layers]
    wo_ref, bo_ref, o_ref = rest[2 * n_hidden_layers:]

    cdt = jnp.bfloat16  # operand dtype fed to the MXU (accumulate in f32)

    # --- time MLP: Linear -> GELU -> Linear on the precomputed sinusoidal embedding ---
    h = jnp.dot(emb_ref[...], wt1_ref[...],
                preferred_element_type=jnp.float32) + bt1_ref[...]
    h = _gelu(h)
    t_emb = jnp.dot(h.astype(cdt), wt2_ref[...],
                    preferred_element_type=jnp.float32) + bt2_ref[...]

    # --- core model: first layer consumes cat([x, t_emb], dim=1) -----------------------
    # Both pieces are 128-lane multiples, so this is a clean lane-aligned concat that
    # feeds a single K=(Mp+Tp) matmul (full 256-deep MXU push on v6e/v7x).
    xt = jnp.concatenate([x_ref[...].astype(cdt), t_emb.astype(cdt)], axis=-1)
    h = jnp.dot(xt, w0_ref[...], preferred_element_type=jnp.float32) + b0_ref[...]
    h = _gelu(h)
    for i in range(n_hidden_layers):
        h = _gelu(jnp.dot(h.astype(cdt), hidden_refs[2 * i][...],
                          preferred_element_type=jnp.float32)
                  + hidden_refs[2 * i + 1][...])

    o_ref[...] = jnp.dot(h.astype(cdt), wo_ref[...],
                         preferred_element_type=jnp.float32) + bo_ref[...]


def init_params(key, M, nhidden, nlayers, time_embed_dim):
    keys = jax.random.split(key, 8)
    scale = 0.02

    def w(k, shape):
        return (scale * jax.random.normal(k, shape)).astype(jnp.float32)

    # NOTE: weights stored (in_features, out_features); loading a real torch
    # checkpoint (out, in) would require a transpose.
    T = time_embed_dim
    params = {
        "wt1": w(keys[0], (T, T)),
        "bt1": jnp.zeros((1, T), jnp.float32),
        "wt2": w(keys[1], (T, T)),
        "bt2": jnp.zeros((1, T), jnp.float32),
        "w_core0": w(keys[2], (M + T, nhidden)),
        "b_core0": jnp.zeros((1, nhidden), jnp.float32),
        "hidden": [],
        "w_out": w(keys[3], (nhidden, M)),
        "b_out": jnp.zeros((1, M), jnp.float32),
    }
    hkeys = jax.random.split(keys[4], max(nlayers - 1, 1))
    for i in range(nlayers - 1):
        params["hidden"].append(
            (w(hkeys[i], (nhidden, nhidden)),
             jnp.zeros((1, nhidden), jnp.float32)))
    return params


def velocity_mlp(x, t, params, *, max_batch_tile=512):
    """Pallas forward of VelocityMLP. x: (B, M) f32, t: (B,) f32 -> (B, M) f32."""
    B, M = x.shape
    T = params["wt1"].shape[0]
    H = params["w_core0"].shape[1]
    half = T // 2

    # Lane-padded feature dims (128) and sublane-padded batch tile.
    Mp = _round_up(M, 128)
    Hp = _round_up(H, 128)
    Tp = _round_up(T, 128)

    # Batch tile: as large as allowed (weights are resident, so per-step DMA is only the
    # small emb/x/out tiles and bigger TB amortizes the ~0.35us per-grid-step overhead),
    # but split into >= 2 grid steps when possible so v7x's two TensorCores both get work.
    TB = min(max_batch_tile, _round_up(B, 8))
    if B > 8 and _round_up(B, TB) // TB < 2:
        TB = max(8, _round_up((B + 1) // 2, 8))
    Bp = _round_up(B, TB)

    wdt = jnp.bfloat16

    def padw(a, r, c):          # zero-pad weight to (r, c), cast to bf16
        return jnp.pad(a, ((0, r - a.shape[0]), (0, c - a.shape[1]))).astype(wdt)

    def padb(a, c):             # zero-pad bias (1, c), keep f32 (added to the f32 acc)
        return jnp.pad(a, ((0, 0), (0, c - a.shape[1]))).astype(jnp.float32)

    wt1 = padw(params["wt1"], Tp, Tp)
    bt1 = padb(params["bt1"], Tp)
    wt2 = padw(params["wt2"], Tp, Tp)
    bt2 = padb(params["bt2"], Tp)

    w0_raw = params["w_core0"]                           # (M + T, H)
    w0 = jnp.concatenate([padw(w0_raw[:M], Mp, Hp),      # rows that multiply x
                          padw(w0_raw[M:], Tp, Hp)],     # rows that multiply t_emb
                         axis=0)                         # (Mp + Tp, Hp)
    b0 = padb(params["b_core0"], Hp)

    hidden_flat = []
    for wh, bh in params["hidden"]:
        hidden_flat += [padw(wh, Hp, Hp), padb(bh, Hp)]

    wo = padw(params["w_out"], Hp, Mp)
    bo = padb(params["b_out"], Mp)

    # PositionalEmbedding hoisted to the wrapper: one tiny (B, T) sin/cos computation
    # instead of per-grid-step EUP work inside the kernel.
    # (matches torch for half >= 2; torch divides by zero for half_dim == 1)
    freqs = jnp.exp(jnp.arange(half, dtype=jnp.float32)
                    * -(math.log(10000.0) / max(half - 1, 1)))
    args = t.astype(jnp.float32).reshape(B, 1) * freqs.reshape(1, half)
    emb = jnp.concatenate([jnp.sin(args), jnp.cos(args)], axis=-1)    # (B, 2*half)
    if T % 2 == 1:                                                    # torch F.pad branch
        emb = jnp.pad(emb, ((0, 0), (0, 1)))
    emb_p = jnp.pad(emb, ((0, Bp - B), (0, Tp - T))).astype(wdt)

    # x stays f32 (cast to bf16 in-kernel); skip the pad copy when already aligned.
    if Bp == B and Mp == M and x.dtype == jnp.float32:
        x_p = x
    else:
        x_p = jnp.pad(x.astype(jnp.float32), ((0, Bp - B), (0, Mp - M)))

    weight_inputs = [wt1, bt1, wt2, bt2, w0, b0, *hidden_flat, wo, bo]
    inputs = [emb_p, x_p] + weight_inputs

    # VMEM budget derived from the actual generation (v7x 64 MiB/TC, v5e/v6e 128 MiB).
    cap = _vmem_cap_bytes()
    resident_bytes = sum(a.size * a.dtype.itemsize for a in weight_inputs)
    if resident_bytes > int(0.7 * cap):
        # TODO(synk): layer-stream hidden weights from HBM (pl.ANY + manual
        # double-buffered pltpu.make_async_copy) for configs this large.
        raise NotImplementedError(
            f"resident weights ({resident_bytes >> 20} MiB) exceed ~70% of per-core "
            f"VMEM ({cap >> 20} MiB); layer streaming is not implemented")
    io_bytes = TB * (Tp * 2 + Mp * 4 + Mp * 4)       # emb(bf16) + x(f32) + out(f32) tiles
    act_bytes = TB * (Mp + 2 * Tp + 4 * Hp) * 4      # in-kernel f32 temporaries (rough)
    need = 2 * resident_bytes + 2 * io_bytes + act_bytes + (2 << 20)
    vmem_limit = int(min(max(need, 32 << 20), int(0.85 * cap)))

    kernel = functools.partial(_velocity_kernel, len(params["hidden"]))
    out_shape = jax.ShapeDtypeStruct((Bp, Mp), jnp.float32)
    grid = (Bp // TB,)
    emb_spec = pl.BlockSpec((TB, Tp), lambda i: (i, 0))
    x_spec = pl.BlockSpec((TB, Mp), lambda i: (i, 0))
    out_spec = pl.BlockSpec((TB, Mp), lambda i: (i, 0))
    cparams = pltpu.CompilerParams(
        dimension_semantics=("parallel",),           # shard batch across TCs on v7x
        vmem_limit_bytes=vmem_limit)

    def build(single_buffer_weights):
        def resident_spec(a):
            # Full array, constant block index -> DMA'd once, stays resident in VMEM.
            if single_buffer_weights:
                return pl.BlockSpec(a.shape, lambda i: (0, 0),
                                    pipeline_mode=pl.Buffered(1))
            return pl.BlockSpec(a.shape, lambda i: (0, 0))

        return pl.pallas_call(
            kernel,
            out_shape=out_shape,
            grid=grid,
            in_specs=[emb_spec, x_spec] + [resident_spec(a) for a in weight_inputs],
            out_specs=out_spec,
            compiler_params=cparams,
        )

    try:
        out = build(True)(*inputs)
    except Exception:
        # Fallback if this jax build rejects single-buffered (Buffered(1)) input specs.
        out = build(False)(*inputs)

    if Bp == B and Mp == M:
        return out
    return out[:B, :M]


if __name__ == "__main__":
    # Small shapes consistent with the module: x is (batch, M), t is (batch,)
    B, M, NHIDDEN, NLAYERS, TIME_EMBED_DIM = 8, 8, 32, 2, 32

    key = jax.random.PRNGKey(0)
    k_x, k_t, k_p = jax.random.split(key, 3)

    x = jax.random.normal(k_x, (B, M), dtype=jnp.float32)
    t = jax.random.uniform(k_t, (B,), dtype=jnp.float32)
    params = init_params(k_p, M, NHIDDEN, NLAYERS, TIME_EMBED_DIM)

    velocity = velocity_mlp(x, t, params)
    jax.block_until_ready(velocity)
    assert velocity.shape == (B, M) and velocity.dtype == jnp.float32
    print("KERNEL_OK")
</pallas_src>

<mosaic_0001>
module attributes {stable_mosaic.version = 11 : i64} {
  func.func @_velocity_kernel(%arg0: i32, %arg1: memref<8x128xbf16, #tpu.memory_space<vmem>>, %arg2: memref<8x128xf32, #tpu.memory_space<vmem>>, %arg3: memref<128x128xbf16, #tpu.memory_space<vmem>>, %arg4: memref<1x128xf32, #tpu.memory_space<vmem>>, %arg5: memref<128x128xbf16, #tpu.memory_space<vmem>>, %arg6: memref<1x128xf32, #tpu.memory_space<vmem>>, %arg7: memref<256x128xbf16, #tpu.memory_space<vmem>>, %arg8: memref<1x128xf32, #tpu.memory_space<vmem>>, %arg9: memref<128x128xbf16, #tpu.memory_space<vmem>>, %arg10: memref<1x128xf32, #tpu.memory_space<vmem>>, %arg11: memref<128x128xbf16, #tpu.memory_space<vmem>>, %arg12: memref<1x128xf32, #tpu.memory_space<vmem>>, %arg13: memref<8x128xf32, #tpu.memory_space<vmem>>) attributes {dimension_semantics = [#tpu.dimension_semantics<parallel>], iteration_bounds = array<i64: 1>, scalar_prefetch = 0 : i64, scratch_operands = 0 : i64, tpu.core_type = #tpu.core_type<tc>, window_params = [{transform_indices = @transform_0, window_bounds = array<i64: 8, 128>}, {transform_indices = @transform_1, window_bounds = array<i64: 8, 128>}, {pipeline_mode = #tpu.pipeline_mode<synchronous>, transform_indices = @transform_2, window_bounds = array<i64: 128, 128>}, {pipeline_mode = #tpu.pipeline_mode<synchronous>, transform_indices = @transform_3, window_bounds = array<i64: 1, 128>}, {pipeline_mode = #tpu.pipeline_mode<synchronous>, transform_indices = @transform_4, window_bounds = array<i64: 128, 128>}, {pipeline_mode = #tpu.pipeline_mode<synchronous>, transform_indices = @transform_5, window_bounds = array<i64: 1, 128>}, {pipeline_mode = #tpu.pipeline_mode<synchronous>, transform_indices = @transform_6, window_bounds = array<i64: 256, 128>}, {pipeline_mode = #tpu.pipeline_mode<synchronous>, transform_indices = @transform_7, window_bounds = array<i64: 1, 128>}, {pipeline_mode = #tpu.pipeline_mode<synchronous>, transform_indices = @transform_8, window_bounds = array<i64: 128, 128>}, {pipeline_mode = #tpu.pipeline_mode<synchronous>, transform_indices = @transform_9, window_bounds = array<i64: 1, 128>}, {pipeline_mode = #tpu.pipeline_mode<synchronous>, transform_indices = @transform_10, window_bounds = array<i64: 128, 128>}, {pipeline_mode = #tpu.pipeline_mode<synchronous>, transform_indices = @transform_11, window_bounds = array<i64: 1, 128>}, {transform_indices = @transform_12, window_bounds = array<i64: 8, 128>}]} {
    %c0 = arith.constant 0 : index
    %c0_0 = arith.constant 0 : index
    %0 = vector.load %arg1[%c0, %c0_0] : memref<8x128xbf16, #tpu.memory_space<vmem>>, vector<8x128xbf16>
    %c0_1 = arith.constant 0 : index
    %c0_2 = arith.constant 0 : index
    %1 = vector.load %arg3[%c0_1, %c0_2] : memref<128x128xbf16, #tpu.memory_space<vmem>>, vector<128x128xbf16>
    %cst = arith.constant dense<0.000000e+00> : vector<8x128xf32>
    %2 = tpu.matmul %0, %1, %cst {dimension_numbers = #tpu.dot_dimension_numbers<[1], [0], [0], [1], [0, 0, 1, 1], [], []>} : vector<8x128xbf16>, vector<128x128xbf16>, vector<8x128xf32> -> vector<8x128xf32>
    %c0_3 = arith.constant 0 : index
    %c0_4 = arith.constant 0 : index
    %3 = vector.load %arg4[%c0_3, %c0_4] : memref<1x128xf32, #tpu.memory_space<vmem>>, vector<1x128xf32>
    %4 = vector.broadcast %3 : vector<1x128xf32> to vector<8x128xf32>
    %5 = arith.addf %2, %4 : vector<8x128xf32>
    %6 = arith.mulf %5, %5 : vector<8x128xf32>
    %7 = arith.mulf %5, %6 : vector<8x128xf32>
    %cst_5 = arith.constant 4.471500e-02 : f32
    %8 = vector.broadcast %cst_5 : f32 to vector<8x128xf32>
    %9 = arith.mulf %8, %7 : vector<8x128xf32>
    %10 = arith.addf %5, %9 : vector<8x128xf32>
    %cst_6 = arith.constant 0.797884583 : f32
    %11 = vector.broadcast %cst_6 : f32 to vector<8x128xf32>
    %12 = arith.mulf %11, %10 : vector<8x128xf32>
    %13 = math.tanh %12 : vector<8x128xf32>
    %cst_7 = arith.constant 1.000000e+00 : f32
    %14 = vector.broadcast %cst_7 : f32 to vector<8x128xf32>
    %15 = arith.addf %14, %13 : vector<8x128xf32>
    %cst_8 = arith.constant 5.000000e-01 : f32
    %16 = vector.broadcast %cst_8 : f32 to vector<8x128xf32>
    %17 = arith.mulf %16, %15 : vector<8x128xf32>
    %18 = arith.mulf %5, %17 : vector<8x128xf32>
    %19 = arith.truncf %18 : vector<8x128xf32> to vector<8x128xbf16>
    %c0_9 = arith.constant 0 : index
    %c0_10 = arith.constant 0 : index
    %20 = vector.load %arg5[%c0_9, %c0_10] : memref<128x128xbf16, #tpu.memory_space<vmem>>, vector<128x128xbf16>
    %cst_11 = arith.constant dense<0.000000e+00> : vector<8x128xf32>
    %21 = tpu.matmul %19, %20, %cst_11 {dimension_numbers = #tpu.dot_dimension_numbers<[1], [0], [0], [1], [0, 0, 1, 1], [], []>} : vector<8x128xbf16>, vector<128x128xbf16>, vector<8x128xf32> -> vector<8x128xf32>
    %c0_12 = arith.constant 0 : index
    %c0_13 = arith.constant 0 : index
    %22 = vector.load %arg6[%c0_12, %c0_13] : memref<1x128xf32, #tpu.memory_space<vmem>>, vector<1x128xf32>
    %23 = vector.broadcast %22 : vector<1x128xf32> to vector<8x128xf32>
    %24 = arith.addf %21, %23 : vector<8x128xf32>
    %c0_14 = arith.constant 0 : index
    %c0_15 = arith.constant 0 : index
    %25 = vector.load %arg2[%c0_14, %c0_15] : memref<8x128xf32, #tpu.memory_space<vmem>>, vector<8x128xf32>
    %26 = arith.truncf %25 : vector<8x128xf32> to vector<8x128xbf16>
    %27 = arith.truncf %24 : vector<8x128xf32> to vector<8x128xbf16>
    %28 = tpu.concatenate %26, %27 in 1 : vector<8x128xbf16>, vector<8x128xbf16> -> vector<8x256xbf16>
    %c0_16 = arith.constant 0 : index
    %c0_17 = arith.constant 0 : index
    %29 = vector.load %arg7[%c0_16, %c0_17] : memref<256x128xbf16, #tpu.memory_space<vmem>>, vector<256x128xbf16>
    %cst_18 = arith.constant dense<0.000000e+00> : vector<8x128xf32>
    %30 = tpu.matmul %28, %29, %cst_18 {dimension_numbers = #tpu.dot_dimension_numbers<[1], [0], [0], [1], [0, 0, 1, 1], [], []>} : vector<8x256xbf16>, vector<256x128xbf16>, vector<8x128xf32> -> vector<8x128xf32>
    %c0_19 = arith.constant 0 : index
    %c0_20 = arith.constant 0 : index
    %31 = vector.load %arg8[%c0_19, %c0_20] : memref<1x128xf32, #tpu.memory_space<vmem>>, vector<1x128xf32>
    %32 = vector.broadcast %31 : vector<1x128xf32> to vector<8x128xf32>
    %33 = arith.addf %30, %32 : vector<8x128xf32>
    %34 = arith.mulf %33, %33 : vector<8x128xf32>
    %35 = arith.mulf %33, %34 : vector<8x128xf32>
    %cst_21 = arith.constant 4.471500e-02 : f32
    %36 = vector.broadcast %cst_21 : f32 to vector<8x128xf32>
    %37 = arith.mulf %36, %35 : vector<8x128xf32>
    %38 = arith.addf %33, %37 : vector<8x128xf32>
    %cst_22 = arith.constant 0.797884583 : f32
    %39 = vector.broadcast %cst_22 : f32 to vector<8x128xf32>
    %40 = arith.mulf %39, %38 : vector<8x128xf32>
    %41 = math.tanh %40 : vector<8x128xf32>
    %cst_23 = arith.constant 1.000000e+00 : f32
    %42 = vector.broadcast %cst_23 : f32 to vector<8x128xf32>
    %43 = arith.addf %42, %41 : vector<8x128xf32>
    %cst_24 = arith.constant 5.000000e-01 : f32
    %44 = vector.broadcast %cst_24 : f32 to vector<8x128xf32>
    %45 = arith.mulf %44, %43 : vector<8x128xf32>
    %46 = arith.mulf %33, %45 : vector<8x128xf32>
    %47 = arith.truncf %46 : vector<8x128xf32> to vector<8x128xbf16>
    %c0_25 = arith.constant 0 : index
    %c0_26 = arith.constant 0 : index
    %48 = vector.load %arg9[%c0_25, %c0_26] : memref<128x128xbf16, #tpu.memory_space<vmem>>, vector<128x128xbf16>
    %cst_27 = arith.constant dense<0.000000e+00> : vector<8x128xf32>
    %49 = tpu.matmul %47, %48, %cst_27 {dimension_numbers = #tpu.dot_dimension_numbers<[1], [0], [0], [1], [0, 0, 1, 1], [], []>} : vector<8x128xbf16>, vector<128x128xbf16>, vector<8x128xf32> -> vector<8x128xf32>
    %c0_28 = arith.constant 0 : index
    %c0_29 = arith.constant 0 : index
    %50 = vector.load %arg10[%c0_28, %c0_29] : memref<1x128xf32, #tpu.memory_space<vmem>>, vector<1x128xf32>
    %51 = vector.broadcast %50 : vector<1x128xf32> to vector<8x128xf32>
    %52 = arith.addf %49, %51 : vector<8x128xf32>
    %53 = arith.mulf %52, %52 : vector<8x128xf32>
    %54 = arith.mulf %52, %53 : vector<8x128xf32>
    %cst_30 = arith.constant 4.471500e-02 : f32
    %55 = vector.broadcast %cst_30 : f32 to vector<8x128xf32>
    %56 = arith.mulf %55, %54 : vector<8x128xf32>
    %57 = arith.addf %52, %56 : vector<8x128xf32>
    %cst_31 = arith.constant 0.797884583 : f32
    %58 = vector.broadcast %cst_31 : f32 to vector<8x128xf32>
    %59 = arith.mulf %58, %57 : vector<8x128xf32>
    %60 = math.tanh %59 : vector<8x128xf32>
    %cst_32 = arith.constant 1.000000e+00 : f32
    %61 = vector.broadcast %cst_32 : f32 to vector<8x128xf32>
    %62 = arith.addf %61, %60 : vector<8x128xf32>
    %cst_33 = arith.constant 5.000000e-01 : f32
    %63 = vector.broadcast %cst_33 : f32 to vector<8x128xf32>
    %64 = arith.mulf %63, %62 : vector<8x128xf32>
    %65 = arith.mulf %52, %64 : vector<8x128xf32>
    %66 = arith.truncf %65 : vector<8x128xf32> to vector<8x128xbf16>
    %c0_34 = arith.constant 0 : index
    %c0_35 = arith.constant 0 : index
    %67 = vector.load %arg11[%c0_34, %c0_35] : memref<128x128xbf16, #tpu.memory_space<vmem>>, vector<128x128xbf16>
    %cst_36 = arith.constant dense<0.000000e+00> : vector<8x128xf32>
    %68 = tpu.matmul %66, %67, %cst_36 {dimension_numbers = #tpu.dot_dimension_numbers<[1], [0], [0], [1], [0, 0, 1, 1], [], []>} : vector<8x128xbf16>, vector<128x128xbf16>, vector<8x128xf32> -> vector<8x128xf32>
    %c0_37 = arith.constant 0 : index
    %c0_38 = arith.constant 0 : index
    %69 = vector.load %arg12[%c0_37, %c0_38] : memref<1x128xf32, #tpu.memory_space<vmem>>, vector<1x128xf32>
    %70 = vector.broadcast %69 : vector<1x128xf32> to vector<8x128xf32>
    %71 = arith.addf %68, %70 : vector<8x128xf32>
    %c0_39 = arith.constant 0 : index
    %c0_40 = arith.constant 0 : index
    %72 = vector.load %arg13[%c0_39, %c0_40] : memref<8x128xf32, #tpu.memory_space<vmem>>, vector<8x128xf32>
    tpu.vector_store %arg13[%c0_39, %c0_40], %71 {strides = array<i32>} : memref<8x128xf32, #tpu.memory_space<vmem>>, vector<8x128xf32>,
    return
  }
  func.func @transform_0(%arg0: i32) -> (i32, i32) {
    %c0_i32 = arith.constant 0 : i32
    %c0_i32_0 = arith.constant 0 : i32
    return %arg0, %c0_i32 : i32, i32
  }
  func.func @transform_1(%arg0: i32) -> (i32, i32) {
    %c0_i32 = arith.constant 0 : i32
    %c0_i32_0 = arith.constant 0 : i32
    return %arg0, %c0_i32 : i32, i32
  }
  func.func @transform_2(%arg0: i32) -> (i32, i32) {
    %c0_i32 = arith.constant 0 : i32
    %c0_i32_0 = arith.constant 0 : i32
    %c0_i32_1 = arith.constant 0 : i32
    return %c0_i32, %c0_i32_0 : i32, i32
  }
  func.func @transform_3(%arg0: i32) -> (i32, i32) {
    %c0_i32 = arith.constant 0 : i32
    %c0_i32_0 = arith.constant 0 : i32
    %c0_i32_1 = arith.constant 0 : i32
    return %c0_i32, %c0_i32_0 : i32, i32
  }
  func.func @transform_4(%arg0: i32) -> (i32, i32) {
    %c0_i32 = arith.constant 0 : i32
    %c0_i32_0 = arith.constant 0 : i32
    %c0_i32_1 = arith.constant 0 : i32
    return %c0_i32, %c0_i32_0 : i32, i32
  }
  func.func @transform_5(%arg0: i32) -> (i32, i32) {
    %c0_i32 = arith.constant 0 : i32
    %c0_i32_0 = arith.constant 0 : i32
    %c0_i32_1 = arith.constant 0 : i32
    return %c0_i32, %c0_i32_0 : i32, i32
  }
  func.func @transform_6(%arg0: i32) -> (i32, i32) {
    %c0_i32 = arith.constant 0 : i32
    %c0_i32_0 = arith.constant 0 : i32
    %c0_i32_1 = arith.constant 0 : i32
    return %c0_i32, %c0_i32_0 : i32, i32
  }
  func.func @transform_7(%arg0: i32) -> (i32, i32) {
    %c0_i32 = arith.constant 0 : i32
    %c0_i32_0 = arith.constant 0 : i32
    %c0_i32_1 = arith.constant 0 : i32
    return %c0_i32, %c0_i32_0 : i32, i32
  }
  func.func @transform_8(%arg0: i32) -> (i32, i32) {
    %c0_i32 = arith.constant 0 : i32
    %c0_i32_0 = arith.constant 0 : i32
    %c0_i32_1 = arith.constant 0 : i32
    return %c0_i32, %c0_i32_0 : i32, i32
  }
  func.func @transform_9(%arg0: i32) -> (i32, i32) {
    %c0_i32 = arith.constant 0 : i32
    %c0_i32_0 = arith.constant 0 : i32
    %c0_i32_1 = arith.constant 0 : i32
    return %c0_i32, %c0_i32_0 : i32, i32
  }
  func.func @transform_10(%arg0: i32) -> (i32, i32) {
    %c0_i32 = arith.constant 0 : i32
    %c0_i32_0 = arith.constant 0 : i32
    %c0_i32_1 = arith.constant 0 : i32
    return %c0_i32, %c0_i32_0 : i32, i32
  }
  func.func @transform_11(%arg0: i32) -> (i32, i32) {
    %c0_i32 = arith.constant 0 : i32
    %c0_i32_0 = arith.constant 0 : i32
    %c0_i32_1 = arith.constant 0 : i32
    return %c0_i32, %c0_i32_0 : i32, i32
  }
  func.func @transform_12(%arg0: i32) -> (i32, i32) {
    %c0_i32 = arith.constant 0 : i32
    %c0_i32_0 = arith.constant 0 : i32
    return %arg0, %c0_i32 : i32, i32
  }
}

module attributes {stable_mosaic.version = 11 : i64} {
  func.func @_velocity_kernel(%arg0: i32, %arg1: memref<8x128xbf16, #tpu.memory_space<vmem>>, %arg2: memref<8x128xf32, #tpu.memory_space<vmem>>, %arg3: memref<128x128xbf16, #tpu.memory_space<vmem>>, %arg4: memref<1x128xf32, #tpu.memory_space<vmem>>, %arg5: memref<128x128xbf16, #tpu.memory_space<vmem>>, %arg6: memref<1x128xf32, #tpu.memory_space<vmem>>, %arg7: memref<256x128xbf16, #tpu.memory_space<vmem>>, %arg8: memref<1x128xf32, #tpu.memory_space<vmem>>, %arg9: memref<128x128xbf16, #tpu.memory_space<vmem>>, %arg10: memref<1x128xf32, #tpu.memory_space<vmem>>, %arg11: memref<128x128xbf16, #tpu.memory_space<vmem>>, %arg12: memref<1x128xf32, #tpu.memory_space<vmem>>, %arg13: memref<8x128xf32, #tpu.memory_space<vmem>>) attributes {dimension_semantics = [#tpu.dimension_semantics<parallel>], iteration_bounds = array<i64: 1>, scalar_prefetch = 0 : i64, scratch_operands = 0 : i64, tpu.core_type = #tpu.core_type<tc>, window_params = [{transform_indices = @transform_0, window_bounds = array<i64: 8, 128>}, {transform_indices = @transform_1, window_bounds = array<i64: 8, 128>}, {pipeline_mode = #tpu.pipeline_mode<synchronous>, transform_indices = @transform_2, window_bounds = array<i64: 128, 128>}, {pipeline_mode = #tpu.pipeline_mode<synchronous>, transform_indices = @transform_3, window_bounds = array<i64: 1, 128>}, {pipeline_mode = #tpu.pipeline_mode<synchronous>, transform_indices = @transform_4, window_bounds = array<i64: 128, 128>}, {pipeline_mode = #tpu.pipeline_mode<synchronous>, transform_indices = @transform_5, window_bounds = array<i64: 1, 128>}, {pipeline_mode = #tpu.pipeline_mode<synchronous>, transform_indices = @transform_6, window_bounds = array<i64: 256, 128>}, {pipeline_mode = #tpu.pipeline_mode<synchronous>, transform_indices = @transform_7, window_bounds = array<i64: 1, 128>}, {pipeline_mode = #tpu.pipeline_mode<synchronous>, transform_indices = @transform_8, window_bounds = array<i64: 128, 128>}, {pipeline_mode = #tpu.pipeline_mode<synchronous>, transform_indices = @transform_9, window_bounds = array<i64: 1, 128>}, {pipeline_mode = #tpu.pipeline_mode<synchronous>, transform_indices = @transform_10, window_bounds = array<i64: 128, 128>}, {pipeline_mode = #tpu.pipeline_mode<synchronous>, transform_indices = @transform_11, window_bounds = array<i64: 1, 128>}, {transform_indices = @transform_12, window_bounds = array<i64: 8, 128>}]} {
    %c0 = arith.constant 0 : index
    %c0_0 = arith.constant 0 : index
    %0 = vector.load %arg1[%c0, %c0_0] : memref<8x128xbf16, #tpu.memory_space<vmem>>, vector<8x128xbf16>
    %c0_1 = arith.constant 0 : index
    %c0_2 = arith.constant 0 : index
    %1 = vector.load %arg3[%c0_1, %c0_2] : memref<128x128xbf16, #tpu.memory_space<vmem>>, vector<128x128xbf16>
    %cst = arith.constant dense<0.000000e+00> : vector<8x128xf32>
    %2 = tpu.matmul %0, %1, %cst {dimension_numbers = #tpu.dot_dimension_numbers<[1], [0], [0], [1], [0, 0, 1, 1], [], []>} : vector<8x128xbf16>, vector<128x128xbf16>, vector<8x128xf32> -> vector<8x128xf32>
    %c0_3 = arith.constant 0 : index
    %c0_4 = arith.constant 0 : index
    %3 = vector.load %arg4[%c0_3, %c0_4] : memref<1x128xf32, #tpu.memory_space<vmem>>, vector<1x128xf32>
    %4 = vector.broadcast %3 : vector<1x128xf32> to vector<8x128xf32>
    %5 = arith.addf %2, %4 : vector<8x128xf32>
    %6 = arith.mulf %5, %5 : vector<8x128xf32>
    %7 = arith.mulf %5, %6 : vector<8x128xf32>
    %cst_5 = arith.constant 4.471500e-02 : f32
    %8 = vector.broadcast %cst_5 : f32 to vector<8x128xf32>
    %9 = arith.mulf %8, %7 : vector<8x128xf32>
    %10 = arith.addf %5, %9 : vector<8x128xf32>
    %cst_6 = arith.constant 0.797884583 : f32
    %11 = vector.broadcast %cst_6 : f32 to vector<8x128xf32>
    %12 = arith.mulf %11, %10 : vector<8x128xf32>
    %13 = math.tanh %12 : vector<8x128xf32>
    %cst_7 = arith.constant 1.000000e+00 : f32
    %14 = vector.broadcast %cst_7 : f32 to vector<8x128xf32>
    %15 = arith.addf %14, %13 : vector<8x128xf32>
    %cst_8 = arith.constant 5.000000e-01 : f32
    %16 = vector.broadcast %cst_8 : f32 to vector<8x128xf32>
    %17 = arith.mulf %16, %15 : vector<8x128xf32>
    %18 = arith.mulf %5, %17 : vector<8x128xf32>
    %19 = arith.truncf %18 : vector<8x128xf32> to vector<8x128xbf16>
    %c0_9 = arith.constant 0 : index
    %c0_10 = arith.constant 0 : index
    %20 = vector.load %arg5[%c0_9, %c0_10] : memref<128x128xbf16, #tpu.memory_space<vmem>>, vector<128x128xbf16>
    %cst_11 = arith.constant dense<0.000000e+00> : vector<8x128xf32>
    %21 = tpu.matmul %19, %20, %cst_11 {dimension_numbers = #tpu.dot_dimension_numbers<[1], [0], [0], [1], [0, 0, 1, 1], [], []>} : vector<8x128xbf16>, vector<128x128xbf16>, vector<8x128xf32> -> vector<8x128xf32>
    %c0_12 = arith.constant 0 : index
    %c0_13 = arith.constant 0 : index
    %22 = vector.load %arg6[%c0_12, %c0_13] : memref<1x128xf32, #tpu.memory_space<vmem>>, vector<1x128xf32>
    %23 = vector.broadcast %22 : vector<1x128xf32> to vector<8x128xf32>
    %24 = arith.addf %21, %23 : vector<8x128xf32>
    %c0_14 = arith.constant 0 : index
    %c0_15 = arith.constant 0 : index
    %25 = vector.load %arg2[%c0_14, %c0_15] : memref<8x128xf32, #tpu.memory_space<vmem>>, vector<8x128xf32>
    %26 = arith.truncf %25 : vector<8x128xf32> to vector<8x128xbf16>
    %27 = arith.truncf %24 : vector<8x128xf32> to vector<8x128xbf16>
    %28 = tpu.concatenate %26, %27 in 1 : vector<8x128xbf16>, vector<8x128xbf16> -> vector<8x256xbf16>
    %c0_16 = arith.constant 0 : index
    %c0_17 = arith.constant 0 : index
    %29 = vector.load %arg7[%c0_16, %c0_17] : memref<256x128xbf16, #tpu.memory_space<vmem>>, vector<256x128xbf16>
    %cst_18 = arith.constant dense<0.000000e+00> : vector<8x128xf32>
    %30 = tpu.matmul %28, %29, %cst_18 {dimension_numbers = #tpu.dot_dimension_numbers<[1], [0], [0], [1], [0, 0, 1, 1], [], []>} : vector<8x256xbf16>, vector<256x128xbf16>, vector<8x128xf32> -> vector<8x128xf32>
    %c0_19 = arith.constant 0 : index
    %c0_20 = arith.constant 0 : index
    %31 = vector.load %arg8[%c0_19, %c0_20] : memref<1x128xf32, #tpu.memory_space<vmem>>, vector<1x128xf32>
    %32 = vector.broadcast %31 : vector<1x128xf32> to vector<8x128xf32>
    %33 = arith.addf %30, %32 : vector<8x128xf32>
    %34 = arith.mulf %33, %33 : vector<8x128xf32>
    %35 = arith.mulf %33, %34 : vector<8x128xf32>
    %cst_21 = arith.constant 4.471500e-02 : f32
    %36 = vector.broadcast %cst_21 : f32 to vector<8x128xf32>
    %37 = arith.mulf %36, %35 : vector<8x128xf32>
    %38 = arith.addf %33, %37 : vector<8x128xf32>
    %cst_22 = arith.constant 0.797884583 : f32
    %39 = vector.broadcast %cst_22 : f32 to vector<8x128xf32>
    %40 = arith.mulf %39, %38 : vector<8x128xf32>
    %41 = math.tanh %40 : vector<8x128xf32>
    %cst_23 = arith.constant 1.000000e+00 : f32
    %42 = vector.broadcast %cst_23 : f32 to vector<8x128xf32>
    %43 = arith.addf %42, %41 : vector<8x128xf32>
    %cst_24 = arith.constant 5.000000e-01 : f32
    %44 = vector.broadcast %cst_24 : f32 to vector<8x128xf32>
    %45 = arith.mulf %44, %43 : vector<8x128xf32>
    %46 = arith.mulf %33, %45 : vector<8x128xf32>
    %47 = arith.truncf %46 : vector<8x128xf32> to vector<8x128xbf16>
    %c0_25 = arith.constant 0 : index
    %c0_26 = arith.constant 0 : index
    %48 = vector.load %arg9[%c0_25, %c0_26] : memref<128x128xbf16, #tpu.memory_space<vmem>>, vector<128x128xbf16>
    %cst_27 = arith.constant dense<0.000000e+00> : vector<8x128xf32>
    %49 = tpu.matmul %47, %48, %cst_27 {dimension_numbers = #tpu.dot_dimension_numbers<[1], [0], [0], [1], [0, 0, 1, 1], [], []>} : vector<8x128xbf16>, vector<128x128xbf16>, vector<8x128xf32> -> vector<8x128xf32>
    %c0_28 = arith.constant 0 : index
    %c0_29 = arith.constant 0 : index
    %50 = vector.load %arg10[%c0_28, %c0_29] : memref<1x128xf32, #tpu.memory_space<vmem>>, vector<1x128xf32>
    %51 = vector.broadcast %50 : vector<1x128xf32> to vector<8x128xf32>
    %52 = arith.addf %49, %51 : vector<8x128xf32>
    %53 = arith.mulf %52, %52 : vector<8x128xf32>
    %54 = arith.mulf %52, %53 : vector<8x128xf32>
    %cst_30 = arith.constant 4.471500e-02 : f32
    %55 = vector.broadcast %cst_30 : f32 to vector<8x128xf32>
    %56 = arith.mulf %55, %54 : vector<8x128xf32>
    %57 = arith.addf %52, %56 : vector<8x128xf32>
    %cst_31 = arith.constant 0.797884583 : f32
    %58 = vector.broadcast %cst_31 : f32 to vector<8x128xf32>
    %59 = arith.mulf %58, %57 : vector<8x128xf32>
    %60 = math.tanh %59 : vector<8x128xf32>
    %cst_32 = arith.constant 1.000000e+00 : f32
    %61 = vector.broadcast %cst_32 : f32 to vector<8x128xf32>
    %62 = arith.addf %61, %60 : vector<8x128xf32>
    %cst_33 = arith.constant 5.000000e-01 : f32
    %63 = vector.broadcast %cst_33 : f32 to vector<8x128xf32>
    %64 = arith.mulf %63, %62 : vector<8x128xf32>
    %65 = arith.mulf %52, %64 : vector<8x128xf32>
    %66 = arith.truncf %65 : vector<8x128xf32> to vector<8x128xbf16>
    %c0_34 = arith.constant 0 : index
    %c0_35 = arith.constant 0 : index
    %67 = vector.load %arg11[%c0_34, %c0_35] : memref<128x128xbf16, #tpu.memory_space<vmem>>, vector<128x128xbf16>
    %cst_36 = arith.constant dense<0.000000e+00> : vector<8x128xf32>
    %68 = tpu.matmul %66, %67, %cst_36 {dimension_numbers = #tpu.dot_dimension_numbers<[1], [0], [0], [1], [0, 0, 1, 1], [], []>} : vector<8x128xbf16>, vector<128x128xbf16>, vector<8x128xf32> -> vector<8x128xf32>
    %c0_37 = arith.constant 0 : index
    %c0_38 = arith.constant 0 : index
    %69 = vector.load %arg12[%c0_37, %c0_38] : memref<1x128xf32, #tpu.memory_space<vmem>>, vector<1x128xf32>
    %70 = vector.broadcast %69 : vector<1x128xf32> to vector<8x128xf32>
    %71 = arith.addf %68, %70 : vector<8x128xf32>
    %c0_39 = arith.constant 0 : index
    %c0_40 = arith.constant 0 : index
    %72 = vector.load %arg13[%c0_39, %c0_40] : memref<8x128xf32, #tpu.memory_space<vmem>>, vector<8x128xf32>
    tpu.vector_store %arg13[%c0_39, %c0_40], %71 {strides = array<i32>} : memref<8x128xf32, #tpu.memory_space<vmem>>, vector<8x128xf32>,
    return
  }
  func.func @transform_0(%arg0: i32) -> (i32, i32) {
    %c0_i32 = arith.constant 0 : i32
    %c0_i32_0 = arith.constant 0 : i32
    return %arg0, %c0_i32 : i32, i32
  }
  func.func @transform_1(%arg0: i32) -> (i32, i32) {
    %c0_i32 = arith.constant 0 : i32
    %c0_i32_0 = arith.constant 0 : i32
    return %arg0, %c0_i32 : i32, i32
  }
  func.func @transform_2(%arg0: i32) -> (i32, i32) {
    %c0_i32 = arith.constant 0 : i32
    %c0_i32_0 = arith.constant 0 : i32
    %c0_i32_1 = arith.constant 0 : i32
    return %c0_i32, %c0_i32_0 : i32, i32
  }
  func.func @transform_3(%arg0: i32) -> (i32, i32) {
    %c0_i32 = arith.constant 0 : i32
    %c0_i32_0 = arith.constant 0 : i32
    %c0_i32_1 = arith.constant 0 : i32
    return %c0_i32, %c0_i32_0 : i32, i32
  }
  func.func @transform_4(%arg0: i32) -> (i32, i32) {
    %c0_i32 = arith.constant 0 : i32
    %c0_i32_0 = arith.constant 0 : i32
    %c0_i32_1 = arith.constant 0 : i32
    return %c0_i32, %c0_i32_0 : i32, i32
  }
  func.func @transform_5(%arg0: i32) -> (i32, i32) {
    %c0_i32 = arith.constant 0 : i32
    %c0_i32_0 = arith.constant 0 : i32
    %c0_i32_1 = arith.constant 0 : i32
    return %c0_i32, %c0_i32_0 : i32, i32
  }
  func.func @transform_6(%arg0: i32) -> (i32, i32) {
    %c0_i32 = arith.constant 0 : i32
    %c0_i32_0 = arith.constant 0 : i32
    %c0_i32_1 = arith.constant 0 : i32
    return %c0_i32, %c0_i32_0 : i32, i32
  }
  func.func @transform_7(%arg0: i32) -> (i32, i32) {
    %c0_i32 = arith.constant 0 : i32
    %c0_i32_0 = arith.constant 0 : i32
    %c0_i32_1 = arith.constant 0 : i32
    return %c0_i32, %c0_i32_0 : i32, i32
  }
  func.func @transform_8(%arg0: i32) -> (i32, i32) {
    %c0_i32 = arith.constant 0 : i32
    %c0_i32_0 = arith.constant 0 : i32
    %c0_i32_1 = arith.constant 0 : i32
    return %c0_i32, %c0_i32_0 : i32, i32
  }
  func.func @transform_9(%arg0: i32) -> (i32, i32) {
    %c0_i32 = arith.constant 0 : i32
    %c0_i32_0 = arith.constant 0 : i32
    %c0_i32_1 = arith.constant 0 : i32
    return %c0_i32, %c0_i32_0 : i32, i32
  }
  func.func @transform_10(%arg0: i32) -> (i32, i32) {
    %c0_i32 = arith.constant 0 : i32
    %c0_i32_0 = arith.constant 0 : i32
    %c0_i32_1 = arith.constant 0 : i32
    return %c0_i32, %c0_i32_0 : i32, i32
  }
  func.func @transform_11(%arg0: i32) -> (i32, i32) {
    %c0_i32 = arith.constant 0 : i32
    %c0_i32_0 = arith.constant 0 : i32
    %c0_i32_1 = arith.constant 0 : i32
    return %c0_i32, %c0_i32_0 : i32, i32
  }
  func.func @transform_12(%arg0: i32) -> (i32, i32) {
    %c0_i32 = arith.constant 0 : i32
    %c0_i32_0 = arith.constant 0 : i32
    return %arg0, %c0_i32 : i32, i32
  }
}

</mosaic_0001>

<llo_original>
// kernel: tpu_custom_call.1
$region0: #{tpu_custom_call.1}
  #allocation0 [shape = 'u32[]', space=smem, size = 0x4, offset = 0x4, fixed_abs, tag = 'smem constant byte address 0x4 - core index']
  #allocation1 [shape = 'u32[72,128]{1,0:T(1,128)}', space=vmem, size = 0x9000, scoped, tag = 'internal scratch']
  %s0 = inlined_call_operand.hbm [shape: bf16[8,128], index: 0, kind: input, shape index: {}]
  %s1 = inlined_call_operand.hbm [shape: f32[8,128], index: 1, kind: input, shape index: {}]
  %s2 = inlined_call_operand.hbm [shape: bf16[128,128], index: 2, kind: input, shape index: {}]
  %s3 = inlined_call_operand.vmem [shape: f32[1,128], index: 3, kind: input, shape index: {}]
  %s4 = inlined_call_operand.hbm [shape: bf16[128,128], index: 4, kind: input, shape index: {}]
  %s5 = inlined_call_operand.vmem [shape: f32[1,128], index: 5, kind: input, shape index: {}]
  %s6 = inlined_call_operand.hbm [shape: bf16[256,128], index: 6, kind: input, shape index: {}]
  %s7 = inlined_call_operand.vmem [shape: f32[1,128], index: 7, kind: input, shape index: {}]
  %s8 = inlined_call_operand.hbm [shape: bf16[128,128], index: 8, kind: input, shape index: {}]
  %s9 = inlined_call_operand.vmem [shape: f32[1,128], index: 9, kind: input, shape index: {}]
  %s10 = inlined_call_operand.hbm [shape: bf16[128,128], index: 10, kind: input, shape index: {}]
  %s11 = inlined_call_operand.vmem [shape: f32[1,128], index: 11, kind: input, shape index: {}]
  %s12 = inlined_call_operand.hbm [shape: f32[8,128], index: 12, kind: output, shape index: {}]
  %s13 = sld [smem:[#allocation0]]
  $region86: #{tpu_custom_call.1} parent=0
    _
  %s15 = ssub.s32 1, %s13
  %s16 = scalar_select 0, %s15, %s13
  $region1: #{tpu_custom_call.1} parent=0
    #allocation2 [shape = 'u8[2048]{0}', space=vmem, size = 0x800, scoped, tag = 'input window, operand 0, single buffered']
    #allocation3 [shape = 's32[1]{0}', space=sflag, size = 0x4, scoped, tag = 'scoped memory for tpu_custom_call.1']
    #allocation4 [shape = 's32[1]{0}', space=sflag, size = 0x4, scoped, tag = 'scoped memory for tpu_custom_call.1']
    #allocation5 [shape = 'u8[4096]{0}', space=vmem, size = 0x1000, scoped, tag = 'input window, operand 1, single buffered']
    #allocation6 [shape = 's32[1]{0}', space=sflag, size = 0x4, scoped, tag = 'scoped memory for tpu_custom_call.1']
    #allocation7 [shape = 'u8[32768]{0}', space=vmem, size = 0x8000, scoped, tag = 'input window, operand 2, single buffered']
    #allocation8 [shape = 'u8[32768]{0}', space=vmem, size = 0x8000, scoped, tag = 'input window, operand 4, single buffered']
    #allocation9 [shape = 's32[1]{0}', space=sflag, size = 0x4, scoped, tag = 'scoped memory for tpu_custom_call.1']
    #allocation10 [shape = 'u8[65536]{0}', space=vmem, size = 0x10000, scoped, tag = 'input window, operand 6, single buffered']
    #allocation11 [shape = 'u8[32768]{0}', space=vmem, size = 0x8000, scoped, tag = 'input window, operand 8, single buffered']
    #allocation12 [shape = 's32[1]{0}', space=sflag, size = 0x4, scoped, tag = 'scoped memory for tpu_custom_call.1']
    #allocation13 [shape = 'u8[32768]{0}', space=vmem, size = 0x8000, scoped, tag = 'input window, operand 10, single buffered']
    #allocation14 [shape = 'u8[4096]{0}', space=vmem, size = 0x1000, scoped, tag = 'output window, operand 0, single buffered']
    %17 = vsyncpa [#allocation3], 0
    %18 = vsyncpa [#allocation6], 0
    %19 = vsyncpa [#allocation9], 0
    %20 = vsyncpa [#allocation12], 0
    %21 = vsyncpa [#allocation4], 0
    // Predicated region
    $region2: #{tpu_custom_call.1} parent=1 // pred_check
      _
    $region3: #{tpu_custom_call.1} parent=1 // pred_check_branch
      %23 = sbr.rel (0) target = $region5
    $region4: #{tpu_custom_call.1} parent=1 // pred_region
      %25 = vsyncadd [#allocation3], 0
      %s27 = sshll.u32 %s0, 4
      %s28 = int_to_ptr.hbm [resolvable:$true] %s27
      %s29 = sshll.u32 [#allocation2], 4
      %s30 = int_to_ptr.vmem [resolvable:$true] %s29
      %32 = dma.hbm_to_vmem [thread:$0]  %s28, 64, %s30, [#allocation3]
    $region5: #{tpu_custom_call.1} parent=1 // pred_fallthru
      _
    // Predicated region
    $region6: #{tpu_custom_call.1} parent=1 // pred_check
      _
    $region7: #{tpu_custom_call.1} parent=1 // pred_check_branch
      %34 = sbr.rel (0) target = $region9
    $region8: #{tpu_custom_call.1} parent=1 // pred_region
      %36 = vsyncadd [#allocation6], 0
      %s38 = sshll.u32 %s1, 4
      %s39 = int_to_ptr.hbm [resolvable:$true] %s38
      %s40 = sshll.u32 [#allocation5], 4
      %s41 = int_to_ptr.vmem [resolvable:$true] %s40
      %43 = dma.hbm_to_vmem [thread:$0]  %s39, 128, %s41, [#allocation6]
    $region9: #{tpu_custom_call.1} parent=1 // pred_fallthru
      _
    // Predicated region
    $region10: #{tpu_custom_call.1} parent=1 // pred_check
      _
    $region11: #{tpu_custom_call.1} parent=1 // pred_check_branch
      %45 = sbr.rel (0) target = $region13
    $region12: #{tpu_custom_call.1} parent=1 // pred_region
      %47 = vsyncadd [#allocation6], 0
      %s48 = sshll.u32 %s2, 4
      %s49 = int_to_ptr.hbm [resolvable:$true] %s48
      %s50 = sshll.u32 [#allocation7], 4
      %s51 = int_to_ptr.vmem [resolvable:$true] %s50
      %56 = dma.hbm_to_vmem [thread:$0]  %s49, 1024, %s51, [#allocation6], 64, 64, 4
    $region13: #{tpu_custom_call.1} parent=1 // pred_fallthru
      _
    // Predicated region
    $region14: #{tpu_custom_call.1} parent=1 // pred_check
      _
    $region15: #{tpu_custom_call.1} parent=1 // pred_check_branch
      %58 = sbr.rel (0) target = $region17
    $region16: #{tpu_custom_call.1} parent=1 // pred_region
      _
    $region17: #{tpu_custom_call.1} parent=1 // pred_fallthru
      _
    // Predicated region
    $region18: #{tpu_custom_call.1} parent=1 // pred_check
      _
    $region19: #{tpu_custom_call.1} parent=1 // pred_check_branch
      %60 = sbr.rel (0) target = $region21
    $region20: #{tpu_custom_call.1} parent=1 // pred_region
      %62 = vsyncadd [#allocation9], 0
      %s63 = sshll.u32 %s4, 4
      %s64 = int_to_ptr.hbm [resolvable:$true] %s63
      %s65 = sshll.u32 [#allocation8], 4
      %s66 = int_to_ptr.vmem [resolvable:$true] %s65
      %71 = dma.hbm_to_vmem [thread:$0]  %s64, 1024, %s66, [#allocation9], 64, 64, 4
    $region21: #{tpu_custom_call.1} parent=1 // pred_fallthru
      _
    // Predicated region
    $region22: #{tpu_custom_call.1} parent=1 // pred_check
      _
    $region23: #{tpu_custom_call.1} parent=1 // pred_check_branch
      %73 = sbr.rel (0) target = $region25
    $region24: #{tpu_custom_call.1} parent=1 // pred_region
      _
    $region25: #{tpu_custom_call.1} parent=1 // pred_fallthru
      _
    // Predicated region
    $region26: #{tpu_custom_call.1} parent=1 // pred_check
      _
    $region27: #{tpu_custom_call.1} parent=1 // pred_check_branch
      %75 = sbr.rel (0) target = $region29
    $region28: #{tpu_custom_call.1} parent=1 // pred_region
      %77 = vsyncadd [#allocation9], 0
      %s78 = sshll.u32 %s6, 4
      %s79 = int_to_ptr.hbm [resolvable:$true] %s78
      %s80 = sshll.u32 [#allocation10], 4
      %s81 = int_to_ptr.vmem [resolvable:$true] %s80
      %86 = dma.hbm_to_vmem [thread:$0]  %s79, 2048, %s81, [#allocation9], 64, 64, 4
    $region29: #{tpu_custom_call.1} parent=1 // pred_fallthru
      _
    // Predicated region
    $region30: #{tpu_custom_call.1} parent=1 // pred_check
      _
    $region31: #{tpu_custom_call.1} parent=1 // pred_check_branch
      %88 = sbr.rel (0) target = $region33
    $region32: #{tpu_custom_call.1} parent=1 // pred_region
      _
    $region33: #{tpu_custom_call.1} parent=1 // pred_fallthru
      _
    // Predicated region
    $region34: #{tpu_custom_call.1} parent=1 // pred_check
      _
    $region35: #{tpu_custom_call.1} parent=1 // pred_check_branch
      %90 = sbr.rel (0) target = $region37
    $region36: #{tpu_custom_call.1} parent=1 // pred_region
      %92 = vsyncadd [#allocation12], 0
      %s93 = sshll.u32 %s8, 4
      %s94 = int_to_ptr.hbm [resolvable:$true] %s93
      %s95 = sshll.u32 [#allocation11], 4
      %s96 = int_to_ptr.vmem [resolvable:$true] %s95
      %101 = dma.hbm_to_vmem [thread:$0]  %s94, 1024, %s96, [#allocation12], 64, 64, 4
    $region37: #{tpu_custom_call.1} parent=1 // pred_fallthru
      _
    // Predicated region
    $region38: #{tpu_custom_call.1} parent=1 // pred_check
      _
    $region39: #{tpu_custom_call.1} parent=1 // pred_check_branch
      %103 = sbr.rel (0) target = $region41
    $region40: #{tpu_custom_call.1} parent=1 // pred_region
      _
    $region41: #{tpu_custom_call.1} parent=1 // pred_fallthru
      _
    // Predicated region
    $region42: #{tpu_custom_call.1} parent=1 // pred_check
      _
    $region43: #{tpu_custom_call.1} parent=1 // pred_check_branch
      %105 = sbr.rel (0) target = $region45
    $region44: #{tpu_custom_call.1} parent=1 // pred_region
      %107 = vsyncadd [#allocation12], 0
      %s108 = sshll.u32 %s10, 4
      %s109 = int_to_ptr.hbm [resolvable:$true] %s108
      %s110 = sshll.u32 [#allocation13], 4
      %s111 = int_to_ptr.vmem [resolvable:$true] %s110
      %116 = dma.hbm_to_vmem [thread:$0]  %s109, 1024, %s111, [#allocation12], 64, 64, 4
    $region45: #{tpu_custom_call.1} parent=1 // pred_fallthru
      _
    // Predicated region
    $region46: #{tpu_custom_call.1} parent=1 // pred_check
      _
    $region47: #{tpu_custom_call.1} parent=1 // pred_check_branch
      %118 = sbr.rel (0) target = $region49
    $region48: #{tpu_custom_call.1} parent=1 // pred_region
      _
    $region49: #{tpu_custom_call.1} parent=1 // pred_fallthru
      _
    // Predicated region
    $region50: #{tpu_custom_call.1} parent=1 // pred_check
      _
    $region51: #{tpu_custom_call.1} parent=1 // pred_check_branch
      %120 = sbr.rel (0) target = $region53
    $region52: #{tpu_custom_call.1} parent=1 // pred_region
      %122 = dma.done [#allocation3], 64
    $region53: #{tpu_custom_call.1} parent=1 // pred_fallthru
      _
    // Predicated region
    $region54: #{tpu_custom_call.1} parent=1 // pred_check
      _
    $region55: #{tpu_custom_call.1} parent=1 // pred_check_branch
      %124 = sbr.rel (0) target = $region57
    $region56: #{tpu_custom_call.1} parent=1 // pred_region
      %126 = dma.done [#allocation6], 128
    $region57: #{tpu_custom_call.1} parent=1 // pred_fallthru
      _
    // Predicated region
    $region58: #{tpu_custom_call.1} parent=1 // pred_check
      _
    $region59: #{tpu_custom_call.1} parent=1 // pred_check_branch
      %128 = sbr.rel (0) target = $region61
    $region60: #{tpu_custom_call.1} parent=1 // pred_region
      %130 = dma.done [#allocation6], 1024
    $region61: #{tpu_custom_call.1} parent=1 // pred_fallthru
      _
    // Predicated region
    $region62: #{tpu_custom_call.1} parent=1 // pred_check
      _
    $region63: #{tpu_custom_call.1} parent=1 // pred_check_branch
      %132 = sbr.rel (0) target = $region65
    $region64: #{tpu_custom_call.1} parent=1 // pred_region
      %134 = dma.done [#allocation9], 1024
    $region65: #{tpu_custom_call.1} parent=1 // pred_fallthru
      _
    // Predicated region
    $region66: #{tpu_custom_call.1} parent=1 // pred_check
      _
    $region67: #{tpu_custom_call.1} parent=1 // pred_check_branch
      %136 = sbr.rel (0) target = $region69
    $region68: #{tpu_custom_call.1} parent=1 // pred_region
      %138 = dma.done [#allocation9], 2048
    $region69: #{tpu_custom_call.1} parent=1 // pred_fallthru
      _
    // Predicated region
    $region70: #{tpu_custom_call.1} parent=1 // pred_check
      _
    $region71: #{tpu_custom_call.1} parent=1 // pred_check_branch
      %140 = sbr.rel (0) target = $region73
    $region72: #{tpu_custom_call.1} parent=1 // pred_region
      %142 = dma.done [#allocation12], 1024
    $region73: #{tpu_custom_call.1} parent=1 // pred_fallthru
      _
    // Predicated region
    $region74: #{tpu_custom_call.1} parent=1 // pred_check
      _
    $region75: #{tpu_custom_call.1} parent=1 // pred_check_branch
      %144 = sbr.rel (0) target = $region77
    $region76: #{tpu_custom_call.1} parent=1 // pred_region
      %146 = dma.done [#allocation12], 1024
    $region77: #{tpu_custom_call.1} parent=1 // pred_fallthru
      _
    %v147 = vld [vmem:[#allocation2] sm:$0xf]
    %v148 = vld [vmem:[#allocation7] sm:$0xf]
    %v149 = vld [vmem:[#allocation7 + $0x4] sm:$0xf]
    %v150 = vld [vmem:[#allocation7 + $0x8] sm:$0xf]
    %v151 = vld [vmem:[#allocation7 + $0xc] sm:$0xf]
    %v152 = vld [vmem:[#allocation7 + $0x10] sm:$0xf]
    %v153 = vld [vmem:[#allocation7 + $0x14] sm:$0xf]
    %v154 = vld [vmem:[#allocation7 + $0x18] sm:$0xf]
    %v155 = vld [vmem:[#allocation7 + $0x1c] sm:$0xf]
    %v156 = vld [vmem:[#allocation7 + $0x20] sm:$0xf]
    %v157 = vld [vmem:[#allocation7 + $0x24] sm:$0xf]
    %v158 = vld [vmem:[#allocation7 + $0x28] sm:$0xf]
    %v159 = vld [vmem:[#allocation7 + $0x2c] sm:$0xf]
    %v160 = vld [vmem:[#allocation7 + $0x30] sm:$0xf]
    %v161 = vld [vmem:[#allocation7 + $0x34] sm:$0xf]
    %v162 = vld [vmem:[#allocation7 + $0x38] sm:$0xf]
    %v163 = vld [vmem:[#allocation7 + $0x3c] sm:$0xf]
    %v164 = vld [vmem:[%s3] sm:$0x1]
    %v166 = vperm.slane %v164, 0
    %v184 = vunpack.c.l.b16 %v148
    %v185 = vunpack.c.l.b16 %v149
    %v186 = vunpack.c.l.b16 %v150
    %v187 = vunpack.c.l.b16 %v151
    %v188 = vunpack.c.l.b16 %v152
    %v189 = vunpack.c.l.b16 %v153
    %v190 = vunpack.c.l.b16 %v154
    %v191 = vunpack.c.l.b16 %v155
    %v192 = vunpack.c.l.b16 %v156
    %v193 = vunpack.c.l.b16 %v157
    %v194 = vunpack.c.l.b16 %v158
    %v195 = vunpack.c.l.b16 %v159
    %v196 = vunpack.c.l.b16 %v160
    %v197 = vunpack.c.l.b16 %v161
    %v198 = vunpack.c.l.b16 %v162
    %v199 = vunpack.c.l.b16 %v163
    %v200 = vpack.c.b16 %v185, %v184
    %v201 = vpack.c.b16 %v187, %v186
    %v202 = vpack.c.b16 %v189, %v188
    %v203 = vpack.c.b16 %v191, %v190
    %v204 = vpack.c.b16 %v193, %v192
    %v205 = vpack.c.b16 %v195, %v194
    %v206 = vpack.c.b16 %v197, %v196
    %v207 = vpack.c.b16 %v199, %v198
    %216 = vmatpush.bf16.msra.mxu0 %v207
    %217 = vmatpush.bf16.msra.mxu0 %v206
    %218 = vmatpush.bf16.msra.mxu0 %v205
    %219 = vmatpush.bf16.msra.mxu0 %v204
    %220 = vmatpush.bf16.msra.mxu0 %v203
    %221 = vmatpush.bf16.msra.mxu0 %v202
    %222 = vmatpush.bf16.msra.mxu0 %v201
    %223 = vmatpush.bf16.msra.mxu0 %v200
    %224 = vmatmul.bf16.gmra.mxu0 %v147
    %v225 = vpop.f32.mrf.mxu0
    %v226 = vadd.f32 %v166, %v225
    %v227 = vpop.f32.mrf.mxu0
    %228 = vdwg.mxu0
    %v229 = vmul.f32 %v226, %v226
    %v230 = vmul.f32 %v226, %v229
    %v231 = vmul.f32 %v230, 0.044715
    %v232 = vadd.f32 %v226, %v231
    %v233 = vmul.f32 %v232, 0.7978846
    %v234 = vtanh.pop %v233
    %v235 = vadd.f32 %v234, 1.0
    %v236 = vmul.f32 %v235, 0.5
    %v237 = vmul.f32 %v226, %v236
    %v238 = vpack.c.bf16 %v237, %v237
    %v239 = vld [vmem:[#allocation8] sm:$0xf]
    %v240 = vld [vmem:[#allocation8 + $0x4] sm:$0xf]
    %v241 = vld [vmem:[#allocation8 + $0x8] sm:$0xf]
    %v242 = vld [vmem:[#allocation8 + $0xc] sm:$0xf]
    %v243 = vld [vmem:[#allocation8 + $0x10] sm:$0xf]
    %v244 = vld [vmem:[#allocation8 + $0x14] sm:$0xf]
    %v245 = vld [vmem:[#allocation8 + $0x18] sm:$0xf]
    %v246 = vld [vmem:[#allocation8 + $0x1c] sm:$0xf]
    %v247 = vld [vmem:[#allocation8 + $0x20] sm:$0xf]
    %v248 = vld [vmem:[#allocation8 + $0x24] sm:$0xf]
    %v249 = vld [vmem:[#allocation8 + $0x28] sm:$0xf]
    %v250 = vld [vmem:[#allocation8 + $0x2c] sm:$0xf]
    %v251 = vld [vmem:[#allocation8 + $0x30] sm:$0xf]
    %v252 = vld [vmem:[#allocation8 + $0x34] sm:$0xf]
    %v253 = vld [vmem:[#allocation8 + $0x38] sm:$0xf]
    %v254 = vld [vmem:[#allocation8 + $0x3c] sm:$0xf]
    %v255 = vld [vmem:[%s5] sm:$0x1]
    %v257 = vperm.slane %v255, 0
    %v275 = vunpack.c.l.b16 %v239
    %v276 = vunpack.c.l.b16 %v240
    %v277 = vunpack.c.l.b16 %v241
    %v278 = vunpack.c.l.b16 %v242
    %v279 = vunpack.c.l.b16 %v243
    %v280 = vunpack.c.l.b16 %v244
    %v281 = vunpack.c.l.b16 %v245
    %v282 = vunpack.c.l.b16 %v246
    %v283 = vunpack.c.l.b16 %v247
    %v284 = vunpack.c.l.b16 %v248
    %v285 = vunpack.c.l.b16 %v249
    %v286 = vunpack.c.l.b16 %v250
    %v287 = vunpack.c.l.b16 %v251
    %v288 = vunpack.c.l.b16 %v252
    %v289 = vunpack.c.l.b16 %v253
    %v290 = vunpack.c.l.b16 %v254
    %v291 = vpack.c.b16 %v276, %v275
    %v292 = vpack.c.b16 %v278, %v277
    %v293 = vpack.c.b16 %v280, %v279
    %v294 = vpack.c.b16 %v282, %v281
    %v295 = vpack.c.b16 %v284, %v283
    %v296 = vpack.c.b16 %v286, %v285
    %v297 = vpack.c.b16 %v288, %v287
    %v298 = vpack.c.b16 %v290, %v289
    %307 = vmatpush.bf16.msra.mxu0 %v298
    %308 = vmatpush.bf16.msra.mxu0 %v297
    %309 = vmatpush.bf16.msra.mxu0 %v296
    %310 = vmatpush.bf16.msra.mxu0 %v295
    %311 = vmatpush.bf16.msra.mxu0 %v294
    %312 = vmatpush.bf16.msra.mxu0 %v293
    %313 = vmatpush.bf16.msra.mxu0 %v292
    %314 = vmatpush.bf16.msra.mxu0 %v291
    %315 = vmatmul.bf16.gmra.mxu0 %v238
    %v316 = vpop.f32.mrf.mxu0
    %v317 = vadd.f32 %v257, %v316
    %v318 = vpop.f32.mrf.mxu0
    %319 = vdwg.mxu0
    %v320 = vld [vmem:[#allocation5] sm:$0xff]
    %v321 = vpack.c.bf16 %v320, %v320
    %v322 = vpack.c.bf16 %v317, %v317
    %v323 = vld [vmem:[#allocation10] sm:$0xf]
    %v324 = vld [vmem:[#allocation10 + $0x4] sm:$0xf]
    %v325 = vld [vmem:[#allocation10 + $0x8] sm:$0xf]
    %v326 = vld [vmem:[#allocation10 + $0xc] sm:$0xf]
    %v327 = vld [vmem:[#allocation10 + $0x10] sm:$0xf]
    %v328 = vld [vmem:[#allocation10 + $0x14] sm:$0xf]
    %v329 = vld [vmem:[#allocation10 + $0x18] sm:$0xf]
    %v330 = vld [vmem:[#allocation10 + $0x1c] sm:$0xf]
    %v331 = vld [vmem:[#allocation10 + $0x20] sm:$0xf]
    %v332 = vld [vmem:[#allocation10 + $0x24] sm:$0xf]
    %v333 = vld [vmem:[#allocation10 + $0x28] sm:$0xf]
    %v334 = vld [vmem:[#allocation10 + $0x2c] sm:$0xf]
    %v335 = vld [vmem:[#allocation10 + $0x30] sm:$0xf]
    %v336 = vld [vmem:[#allocation10 + $0x34] sm:$0xf]
    %v337 = vld [vmem:[#allocation10 + $0x38] sm:$0xf]
    %v338 = vld [vmem:[#allocation10 + $0x3c] sm:$0xf]
    %v339 = vld [vmem:[#allocation10 + $0x40] sm:$0xf]
    %v340 = vld [vmem:[#allocation10 + $0x44] sm:$0xf]
    %v341 = vld [vmem:[#allocation10 + $0x48] sm:$0xf]
    %v342 = vld [vmem:[#allocation10 + $0x4c] sm:$0xf]
    %v343 = vld [vmem:[#allocation10 + $0x50] sm:$0xf]
    %v344 = vld [vmem:[#allocation10 + $0x54] sm:$0xf]
    %v345 = vld [vmem:[#allocation10 + $0x58] sm:$0xf]
    %v346 = vld [vmem:[#allocation10 + $0x5c] sm:$0xf]
    %v347 = vld [vmem:[#allocation10 + $0x60] sm:$0xf]
    %v348 = vld [vmem:[#allocation10 + $0x64] sm:$0xf]
    %v349 = vld [vmem:[#allocation10 + $0x68] sm:$0xf]
    %v350 = vld [vmem:[#allocation10 + $0x6c] sm:$0xf]
    %v351 = vld [vmem:[#allocation10 + $0x70] sm:$0xf]
    %v352 = vld [vmem:[#allocation10 + $0x74] sm:$0xf]
    %v353 = vld [vmem:[#allocation10 + $0x78] sm:$0xf]
    %v354 = vld [vmem:[#allocation10 + $0x7c] sm:$0xf]
    %v355 = vld [vmem:[%s7] sm:$0x1]
    %v357 = vperm.slane %v355, 0
    %v391 = vunpack.c.l.b16 %v323
    %v392 = vunpack.c.l.b16 %v324
    %v393 = vunpack.c.l.b16 %v325
    %v394 = vunpack.c.l.b16 %v326
    %v395 = vunpack.c.l.b16 %v327
    %v396 = vunpack.c.l.b16 %v328
    %v397 = vunpack.c.l.b16 %v329
    %v398 = vunpack.c.l.b16 %v330
    %v399 = vunpack.c.l.b16 %v331
    %v400 = vunpack.c.l.b16 %v332
    %v401 = vunpack.c.l.b16 %v333
    %v402 = vunpack.c.l.b16 %v334
    %v403 = vunpack.c.l.b16 %v335
    %v404 = vunpack.c.l.b16 %v336
    %v405 = vunpack.c.l.b16 %v337
    %v406 = vunpack.c.l.b16 %v338
    %v407 = vunpack.c.l.b16 %v339
    %v408 = vunpack.c.l.b16 %v340
    %v409 = vunpack.c.l.b16 %v341
    %v410 = vunpack.c.l.b16 %v342
    %v411 = vunpack.c.l.b16 %v343
    %v412 = vunpack.c.l.b16 %v344
    %v413 = vunpack.c.l.b16 %v345
    %v414 = vunpack.c.l.b16 %v346
    %v415 = vunpack.c.l.b16 %v347
    %v416 = vunpack.c.l.b16 %v348
    %v417 = vunpack.c.l.b16 %v349
    %v418 = vunpack.c.l.b16 %v350
    %v419 = vunpack.c.l.b16 %v351
    %v420 = vunpack.c.l.b16 %v352
    %v421 = vunpack.c.l.b16 %v353
    %v422 = vunpack.c.l.b16 %v354
    %v423 = vpack.c.b16 %v392, %v391
    %v424 = vpack.c.b16 %v394, %v393
    %v425 = vpack.c.b16 %v396, %v395
    %v426 = vpack.c.b16 %v398, %v397
    %v427 = vpack.c.b16 %v400, %v399
    %v428 = vpack.c.b16 %v402, %v401
    %v429 = vpack.c.b16 %v404, %v403
    %v430 = vpack.c.b16 %v406, %v405
    %v431 = vpack.c.b16 %v408, %v407
    %v432 = vpack.c.b16 %v410, %v409
    %v433 = vpack.c.b16 %v412, %v411
    %v434 = vpack.c.b16 %v414, %v413
    %v435 = vpack.c.b16 %v416, %v415
    %v436 = vpack.c.b16 %v418, %v417
    %v437 = vpack.c.b16 %v420, %v419
    %v438 = vpack.c.b16 %v422, %v421
    %455 = vmatpush.bf16.msra.mxu0 %v430
    %456 = vmatpush.bf16.msra.mxu0 %v429
    %457 = vmatpush.bf16.msra.mxu0 %v428
    %458 = vmatpush.bf16.msra.mxu0 %v427
    %459 = vmatpush.bf16.msra.mxu0 %v426
    %460 = vmatpush.bf16.msra.mxu0 %v425
    %461 = vmatpush.bf16.msra.mxu0 %v424
    %462 = vmatpush.bf16.msra.mxu0 %v423
    %463 = vmatmul.bf16.gmra.mxu0 %v321
    %v464 = vpop.f32.mrf.mxu0
    %v465 = vadd.f32 %v357, %v464
    %v466 = vpop.f32.mrf.mxu0
    %467 = vdwg.mxu0
    %468 = vmatpush.bf16.msra.mxu0 %v438
    %469 = vmatpush.bf16.msra.mxu0 %v437
    %470 = vmatpush.bf16.msra.mxu0 %v436
    %471 = vmatpush.bf16.msra.mxu0 %v435
    %472 = vmatpush.bf16.msra.mxu0 %v434
    %473 = vmatpush.bf16.msra.mxu0 %v433
    %474 = vmatpush.bf16.msra.mxu0 %v432
    %475 = vmatpush.bf16.msra.mxu0 %v431
    %476 = vmatmul.bf16.gmra.mxu0 %v322
    %v477 = vpop.f32.mrf.mxu0
    %v478 = vadd.f32 %v465, %v477
    %v479 = vpop.f32.mrf.mxu0
    %480 = vdwg.mxu0
    %v481 = vmul.f32 %v478, %v478
    %v482 = vmul.f32 %v478, %v481
    %v483 = vmul.f32 %v482, 0.044715
    %v484 = vadd.f32 %v478, %v483
    %v485 = vmul.f32 %v484, 0.7978846
    %v486 = vtanh.pop %v485
    %v487 = vadd.f32 %v486, 1.0
    %v488 = vmul.f32 %v487, 0.5
    %v489 = vmul.f32 %v478, %v488
    %v490 = vpack.c.bf16 %v489, %v489
    %v491 = vld [vmem:[#allocation11] sm:$0xf]
    %v492 = vld [vmem:[#allocation11 + $0x4] sm:$0xf]
    %v493 = vld [vmem:[#allocation11 + $0x8] sm:$0xf]
    %v494 = vld [vmem:[#allocation11 + $0xc] sm:$0xf]
    %v495 = vld [vmem:[#allocation11 + $0x10] sm:$0xf]
    %v496 = vld [vmem:[#allocation11 + $0x14] sm:$0xf]
    %v497 = vld [vmem:[#allocation11 + $0x18] sm:$0xf]
    %v498 = vld [vmem:[#allocation11 + $0x1c] sm:$0xf]
    %v499 = vld [vmem:[#allocation11 + $0x20] sm:$0xf]
    %v500 = vld [vmem:[#allocation11 + $0x24] sm:$0xf]
    %v501 = vld [vmem:[#allocation11 + $0x28] sm:$0xf]
    %v502 = vld [vmem:[#allocation11 + $0x2c] sm:$0xf]
    %v503 = vld [vmem:[#allocation11 + $0x30] sm:$0xf]
    %v504 = vld [vmem:[#allocation11 + $0x34] sm:$0xf]
    %v505 = vld [vmem:[#allocation11 + $0x38] sm:$0xf]
    %v506 = vld [vmem:[#allocation11 + $0x3c] sm:$0xf]
    %v507 = vld [vmem:[%s9] sm:$0x1]
    %v509 = vperm.slane %v507, 0
    %v527 = vunpack.c.l.b16 %v491
    %v528 = vunpack.c.l.b16 %v492
    %v529 = vunpack.c.l.b16 %v493
    %v530 = vunpack.c.l.b16 %v494
    %v531 = vunpack.c.l.b16 %v495
    %v532 = vunpack.c.l.b16 %v496
    %v533 = vunpack.c.l.b16 %v497
    %v534 = vunpack.c.l.b16 %v498
    %v535 = vunpack.c.l.b16 %v499
    %v536 = vunpack.c.l.b16 %v500
    %v537 = vunpack.c.l.b16 %v501
    %v538 = vunpack.c.l.b16 %v502
    %v539 = vunpack.c.l.b16 %v503
    %v540 = vunpack.c.l.b16 %v504
    %v541 = vunpack.c.l.b16 %v505
    %v542 = vunpack.c.l.b16 %v506
    %v543 = vpack.c.b16 %v528, %v527
    %v544 = vpack.c.b16 %v530, %v529
    %v545 = vpack.c.b16 %v532, %v531
    %v546 = vpack.c.b16 %v534, %v533
    %v547 = vpack.c.b16 %v536, %v535
    %v548 = vpack.c.b16 %v538, %v537
    %v549 = vpack.c.b16 %v540, %v539
    %v550 = vpack.c.b16 %v542, %v541
    %559 = vmatpush.bf16.msra.mxu0 %v550
    %560 = vmatpush.bf16.msra.mxu0 %v549
    %561 = vmatpush.bf16.msra.mxu0 %v548
    %562 = vmatpush.bf16.msra.mxu0 %v547
    %563 = vmatpush.bf16.msra.mxu0 %v546
    %564 = vmatpush.bf16.msra.mxu0 %v545
    %565 = vmatpush.bf16.msra.mxu0 %v544
    %566 = vmatpush.bf16.msra.mxu0 %v543
    %567 = vmatmul.bf16.gmra.mxu0 %v490
    %v568 = vpop.f32.mrf.mxu0
    %v569 = vadd.f32 %v509, %v568
    %v570 = vpop.f32.mrf.mxu0
    %571 = vdwg.mxu0
    %v572 = vmul.f32 %v569, %v569
    %v573 = vmul.f32 %v569, %v572
    %v574 = vmul.f32 %v573, 0.044715
    %v575 = vadd.f32 %v569, %v574
    %v576 = vmul.f32 %v575, 0.7978846
    %v577 = vtanh.pop %v576
    %v578 = vadd.f32 %v577, 1.0
    %v579 = vmul.f32 %v578, 0.5
    %v580 = vmul.f32 %v569, %v579
    %v581 = vpack.c.bf16 %v580, %v580
    %v582 = vld [vmem:[#allocation13] sm:$0xf]
    %v583 = vld [vmem:[#allocation13 + $0x4] sm:$0xf]
    %v584 = vld [vmem:[#allocation13 + $0x8] sm:$0xf]
    %v585 = vld [vmem:[#allocation13 + $0xc] sm:$0xf]
    %v586 = vld [vmem:[#allocation13 + $0x10] sm:$0xf]
    %v587 = vld [vmem:[#allocation13 + $0x14] sm:$0xf]
    %v588 = vld [vmem:[#allocation13 + $0x18] sm:$0xf]
    %v589 = vld [vmem:[#allocation13 + $0x1c] sm:$0xf]
    %v590 = vld [vmem:[#allocation13 + $0x20] sm:$0xf]
    %v591 = vld [vmem:[#allocation13 + $0x24] sm:$0xf]
    %v592 = vld [vmem:[#allocation13 + $0x28] sm:$0xf]
    %v593 = vld [vmem:[#allocation13 + $0x2c] sm:$0xf]
    %v594 = vld [vmem:[#allocation13 + $0x30] sm:$0xf]
    %v595 = vld [vmem:[#allocation13 + $0x34] sm:$0xf]
    %v596 = vld [vmem:[#allocation13 + $0x38] sm:$0xf]
    %v597 = vld [vmem:[#allocation13 + $0x3c] sm:$0xf]
    %v598 = vld [vmem:[%s11] sm:$0x1]
    %v600 = vperm.slane %v598, 0
    %v618 = vunpack.c.l.b16 %v582
    %v619 = vunpack.c.l.b16 %v583
    %v620 = vunpack.c.l.b16 %v584
    %v621 = vunpack.c.l.b16 %v585
    %v622 = vunpack.c.l.b16 %v586
    %v623 = vunpack.c.l.b16 %v587
    %v624 = vunpack.c.l.b16 %v588
    %v625 = vunpack.c.l.b16 %v589
    %v626 = vunpack.c.l.b16 %v590
    %v627 = vunpack.c.l.b16 %v591
    %v628 = vunpack.c.l.b16 %v592
    %v629 = vunpack.c.l.b16 %v593
    %v630 = vunpack.c.l.b16 %v594
    %v631 = vunpack.c.l.b16 %v595
    %v632 = vunpack.c.l.b16 %v596
    %v633 = vunpack.c.l.b16 %v597
    %v634 = vpack.c.b16 %v619, %v618
    %v635 = vpack.c.b16 %v621, %v620
    %v636 = vpack.c.b16 %v623, %v622
    %v637 = vpack.c.b16 %v625, %v624
    %v638 = vpack.c.b16 %v627, %v626
    %v639 = vpack.c.b16 %v629, %v628
    %v640 = vpack.c.b16 %v631, %v630
    %v641 = vpack.c.b16 %v633, %v632
    %650 = vmatpush.bf16.msra.mxu0 %v641
    %651 = vmatpush.bf16.msra.mxu0 %v640
    %652 = vmatpush.bf16.msra.mxu0 %v639
    %653 = vmatpush.bf16.msra.mxu0 %v638
    %654 = vmatpush.bf16.msra.mxu0 %v637
    %655 = vmatpush.bf16.msra.mxu0 %v636
    %656 = vmatpush.bf16.msra.mxu0 %v635
    %657 = vmatpush.bf16.msra.mxu0 %v634
    %658 = vmatmul.bf16.gmra.mxu0 %v581
    %v659 = vpop.f32.mrf.mxu0
    %v660 = vadd.f32 %v600, %v659
    %v661 = vpop.f32.mrf.mxu0
    %662 = vdwg.mxu0
    %663 = vst [vmem:[#allocation14] sm:$0xff] %v660
    // Predicated region
    $region78: #{tpu_custom_call.1} parent=1 // pred_check
      _
    $region79: #{tpu_custom_call.1} parent=1 // pred_check_branch
      %665 = sbr.rel (0) target = $region81
    $region80: #{tpu_custom_call.1} parent=1 // pred_region
      %667 = vsyncadd [#allocation4], 0
      %s669 = sshll.u32 [#allocation14], 4
      %s670 = int_to_ptr.vmem [resolvable:$true] %s669
      %s671 = sshll.u32 %s12, 4
      %s672 = int_to_ptr.hbm [resolvable:$true] %s671
      %674 = dma.vmem_to_hbm [thread:$0]  %s670, 128, %s672, [#allocation4]
    $region81: #{tpu_custom_call.1} parent=1 // pred_fallthru
      _
    // Predicated region
    $region82: #{tpu_custom_call.1} parent=1 // pred_check
      _
    $region83: #{tpu_custom_call.1} parent=1 // pred_check_branch
      %676 = sbr.rel (0) target = $region85
    $region84: #{tpu_custom_call.1} parent=1 // pred_region
      %678 = dma.done [#allocation4], 128
    $region85: #{tpu_custom_call.1} parent=1 // pred_fallthru
      _
    %679 = vsyncpa [#allocation3], 1
    %680 = vsyncpa [#allocation6], 1
    %681 = vsyncpa [#allocation9], 1
    %682 = vsyncpa [#allocation12], 1
    %683 = vsyncpa [#allocation4], 1

// kernel: tpu_custom_call.1
$region0: #{tpu_custom_call.1}
  #allocation0 [shape = 'u32[]', space=smem, size = 0x4, offset = 0x4, fixed_abs, tag = 'smem constant byte address 0x4 - core index']
  #allocation1 [shape = 'u32[72,128]{1,0:T(1,128)}', space=vmem, size = 0x9000, scoped, tag = 'internal scratch']
  %s0 = inlined_call_operand.hbm [shape: bf16[8,128], index: 0, kind: input, shape index: {}]
  %s1 = inlined_call_operand.hbm [shape: f32[8,128], index: 1, kind: input, shape index: {}]
  %s2 = inlined_call_operand.hbm [shape: bf16[128,128], index: 2, kind: input, shape index: {}]
  %s3 = inlined_call_operand.vmem [shape: f32[1,128], index: 3, kind: input, shape index: {}]
  %s4 = inlined_call_operand.hbm [shape: bf16[128,128], index: 4, kind: input, shape index: {}]
  %s5 = inlined_call_operand.vmem [shape: f32[1,128], index: 5, kind: input, shape index: {}]
  %s6 = inlined_call_operand.hbm [shape: bf16[256,128], index: 6, kind: input, shape index: {}]
  %s7 = inlined_call_operand.vmem [shape: f32[1,128], index: 7, kind: input, shape index: {}]
  %s8 = inlined_call_operand.hbm [shape: bf16[128,128], index: 8, kind: input, shape index: {}]
  %s9 = inlined_call_operand.vmem [shape: f32[1,128], index: 9, kind: input, shape index: {}]
  %s10 = inlined_call_operand.hbm [shape: bf16[128,128], index: 10, kind: input, shape index: {}]
  %s11 = inlined_call_operand.vmem [shape: f32[1,128], index: 11, kind: input, shape index: {}]
  %s12 = inlined_call_operand.hbm [shape: f32[8,128], index: 12, kind: output, shape index: {}]
  %s13 = sld [smem:[#allocation0]]
  $region86: #{tpu_custom_call.1} parent=0
    _
  %s15 = ssub.s32 1, %s13
  %s16 = scalar_select 0, %s15, %s13
  $region1: #{tpu_custom_call.1} parent=0
    #allocation2 [shape = 'u8[2048]{0}', space=vmem, size = 0x800, scoped, tag = 'input window, operand 0, single buffered']
    #allocation3 [shape = 's32[1]{0}', space=sflag, size = 0x4, scoped, tag = 'scoped memory for tpu_custom_call.1']
    #allocation4 [shape = 's32[1]{0}', space=sflag, size = 0x4, scoped, tag = 'scoped memory for tpu_custom_call.1']
    #allocation5 [shape = 'u8[4096]{0}', space=vmem, size = 0x1000, scoped, tag = 'input window, operand 1, single buffered']
    #allocation6 [shape = 's32[1]{0}', space=sflag, size = 0x4, scoped, tag = 'scoped memory for tpu_custom_call.1']
    #allocation7 [shape = 'u8[32768]{0}', space=vmem, size = 0x8000, scoped, tag = 'input window, operand 2, single buffered']
    #allocation8 [shape = 'u8[32768]{0}', space=vmem, size = 0x8000, scoped, tag = 'input window, operand 4, single buffered']
    #allocation9 [shape = 's32[1]{0}', space=sflag, size = 0x4, scoped, tag = 'scoped memory for tpu_custom_call.1']
    #allocation10 [shape = 'u8[65536]{0}', space=vmem, size = 0x10000, scoped, tag = 'input window, operand 6, single buffered']
    #allocation11 [shape = 'u8[32768]{0}', space=vmem, size = 0x8000, scoped, tag = 'input window, operand 8, single buffered']
    #allocation12 [shape = 's32[1]{0}', space=sflag, size = 0x4, scoped, tag = 'scoped memory for tpu_custom_call.1']
    #allocation13 [shape = 'u8[32768]{0}', space=vmem, size = 0x8000, scoped, tag = 'input window, operand 10, single buffered']
    #allocation14 [shape = 'u8[4096]{0}', space=vmem, size = 0x1000, scoped, tag = 'output window, operand 0, single buffered']
    %17 = vsyncpa [#allocation3], 0
    %18 = vsyncpa [#allocation6], 0
    %19 = vsyncpa [#allocation9], 0
    %20 = vsyncpa [#allocation12], 0
    %21 = vsyncpa [#allocation4], 0
    // Predicated region
    $region2: #{tpu_custom_call.1} parent=1 // pred_check
      _
    $region3: #{tpu_custom_call.1} parent=1 // pred_check_branch
      %23 = sbr.rel (0) target = $region5
    $region4: #{tpu_custom_call.1} parent=1 // pred_region
      %25 = vsyncadd [#allocation3], 0
      %s27 = sshll.u32 %s0, 4
      %s28 = int_to_ptr.hbm [resolvable:$true] %s27
      %s29 = sshll.u32 [#allocation2], 4
      %s30 = int_to_ptr.vmem [resolvable:$true] %s29
      %32 = dma.hbm_to_vmem [thread:$0]  %s28, 64, %s30, [#allocation3]
    $region5: #{tpu_custom_call.1} parent=1 // pred_fallthru
      _
    // Predicated region
    $region6: #{tpu_custom_call.1} parent=1 // pred_check
      _
    $region7: #{tpu_custom_call.1} parent=1 // pred_check_branch
      %34 = sbr.rel (0) target = $region9
    $region8: #{tpu_custom_call.1} parent=1 // pred_region
      %36 = vsyncadd [#allocation6], 0
      %s38 = sshll.u32 %s1, 4
      %s39 = int_to_ptr.hbm [resolvable:$true] %s38
      %s40 = sshll.u32 [#allocation5], 4
      %s41 = int_to_ptr.vmem [resolvable:$true] %s40
      %43 = dma.hbm_to_vmem [thread:$0]  %s39, 128, %s41, [#allocation6]
    $region9: #{tpu_custom_call.1} parent=1 // pred_fallthru
      _
    // Predicated region
    $region10: #{tpu_custom_call.1} parent=1 // pred_check
      _
    $region11: #{tpu_custom_call.1} parent=1 // pred_check_branch
      %45 = sbr.rel (0) target = $region13
    $region12: #{tpu_custom_call.1} parent=1 // pred_region
      %47 = vsyncadd [#allocation6], 0
      %s48 = sshll.u32 %s2, 4
      %s49 = int_to_ptr.hbm [resolvable:$true] %s48
      %s50 = sshll.u32 [#allocation7], 4
      %s51 = int_to_ptr.vmem [resolvable:$true] %s50
      %56 = dma.hbm_to_vmem [thread:$0]  %s49, 1024, %s51, [#allocation6], 64, 64, 4
    $region13: #{tpu_custom_call.1} parent=1 // pred_fallthru
      _
    // Predicated region
    $region14: #{tpu_custom_call.1} parent=1 // pred_check
      _
    $region15: #{tpu_custom_call.1} parent=1 // pred_check_branch
      %58 = sbr.rel (0) target = $region17
    $region16: #{tpu_custom_call.1} parent=1 // pred_region
      _
    $region17: #{tpu_custom_call.1} parent=1 // pred_fallthru
      _
    // Predicated region
    $region18: #{tpu_custom_call.1} parent=1 // pred_check
      _
    $region19: #{tpu_custom_call.1} parent=1 // pred_check_branch
      %60 = sbr.rel (0) target = $region21
    $region20: #{tpu_custom_call.1} parent=1 // pred_region
      %62 = vsyncadd [#allocation9], 0
      %s63 = sshll.u32 %s4, 4
      %s64 = int_to_ptr.hbm [resolvable:$true] %s63
      %s65 = sshll.u32 [#allocation8], 4
      %s66 = int_to_ptr.vmem [resolvable:$true] %s65
      %71 = dma.hbm_to_vmem [thread:$0]  %s64, 1024, %s66, [#allocation9], 64, 64, 4
    $region21: #{tpu_custom_call.1} parent=1 // pred_fallthru
      _
    // Predicated region
    $region22: #{tpu_custom_call.1} parent=1 // pred_check
      _
    $region23: #{tpu_custom_call.1} parent=1 // pred_check_branch
      %73 = sbr.rel (0) target = $region25
    $region24: #{tpu_custom_call.1} parent=1 // pred_region
      _
    $region25: #{tpu_custom_call.1} parent=1 // pred_fallthru
      _
    // Predicated region
    $region26: #{tpu_custom_call.1} parent=1 // pred_check
      _
    $region27: #{tpu_custom_call.1} parent=1 // pred_check_branch
      %75 = sbr.rel (0) target = $region29
    $region28: #{tpu_custom_call.1} parent=1 // pred_region
      %77 = vsyncadd [#allocation9], 0
      %s78 = sshll.u32 %s6, 4
      %s79 = int_to_ptr.hbm [resolvable:$true] %s78
      %s80 = sshll.u32 [#allocation10], 4
      %s81 = int_to_ptr.vmem [resolvable:$true] %s80
      %86 = dma.hbm_to_vmem [thread:$0]  %s79, 2048, %s81, [#allocation9], 64, 64, 4
    $region29: #{tpu_custom_call.1} parent=1 // pred_fallthru
      _
    // Predicated region
    $region30: #{tpu_custom_call.1} parent=1 // pred_check
      _
    $region31: #{tpu_custom_call.1} parent=1 // pred_check_branch
      %88 = sbr.rel (0) target = $region33
    $region32: #{tpu_custom_call.1} parent=1 // pred_region
      _
    $region33: #{tpu_custom_call.1} parent=1 // pred_fallthru
      _
    // Predicated region
    $region34: #{tpu_custom_call.1} parent=1 // pred_check
      _
    $region35: #{tpu_custom_call.1} parent=1 // pred_check_branch
      %90 = sbr.rel (0) target = $region37
    $region36: #{tpu_custom_call.1} parent=1 // pred_region
      %92 = vsyncadd [#allocation12], 0
      %s93 = sshll.u32 %s8, 4
      %s94 = int_to_ptr.hbm [resolvable:$true] %s93
      %s95 = sshll.u32 [#allocation11], 4
      %s96 = int_to_ptr.vmem [resolvable:$true] %s95
      %101 = dma.hbm_to_vmem [thread:$0]  %s94, 1024, %s96, [#allocation12], 64, 64, 4
    $region37: #{tpu_custom_call.1} parent=1 // pred_fallthru
      _
    // Predicated region
    $region38: #{tpu_custom_call.1} parent=1 // pred_check
      _
    $region39: #{tpu_custom_call.1} parent=1 // pred_check_branch
      %103 = sbr.rel (0) target = $region41
    $region40: #{tpu_custom_call.1} parent=1 // pred_region
      _
    $region41: #{tpu_custom_call.1} parent=1 // pred_fallthru
      _
    // Predicated region
    $region42: #{tpu_custom_call.1} parent=1 // pred_check
      _
    $region43: #{tpu_custom_call.1} parent=1 // pred_check_branch
      %105 = sbr.rel (0) target = $region45
    $region44: #{tpu_custom_call.1} parent=1 // pred_region
      %107 = vsyncadd [#allocation12], 0
      %s108 = sshll.u32 %s10, 4
      %s109 = int_to_ptr.hbm [resolvable:$true] %s108
      %s110 = sshll.u32 [#allocation13], 4
      %s111 = int_to_ptr.vmem [resolvable:$true] %s110
      %116 = dma.hbm_to_vmem [thread:$0]  %s109, 1024, %s111, [#allocation12], 64, 64, 4
    $region45: #{tpu_custom_call.1} parent=1 // pred_fallthru
      _
    // Predicated region
    $region46: #{tpu_custom_call.1} parent=1 // pred_check
      _
    $region47: #{tpu_custom_call.1} parent=1 // pred_check_branch
      %118 = sbr.rel (0) target = $region49
    $region48: #{tpu_custom_call.1} parent=1 // pred_region
      _
    $region49: #{tpu_custom_call.1} parent=1 // pred_fallthru
      _
    // Predicated region
    $region50: #{tpu_custom_call.1} parent=1 // pred_check
      _
    $region51: #{tpu_custom_call.1} parent=1 // pred_check_branch
      %120 = sbr.rel (0) target = $region53
    $region52: #{tpu_custom_call.1} parent=1 // pred_region
      %122 = dma.done [#allocation3], 64
    $region53: #{tpu_custom_call.1} parent=1 // pred_fallthru
      _
    // Predicated region
    $region54: #{tpu_custom_call.1} parent=1 // pred_check
      _
    $region55: #{tpu_custom_call.1} parent=1 // pred_check_branch
      %124 = sbr.rel (0) target = $region57
    $region56: #{tpu_custom_call.1} parent=1 // pred_region
      %126 = dma.done [#allocation6], 128
    $region57: #{tpu_custom_call.1} parent=1 // pred_fallthru
      _
    // Predicated region
    $region58: #{tpu_custom_call.1} parent=1 // pred_check
      _
    $region59: #{tpu_custom_call.1} parent=1 // pred_check_branch
      %128 = sbr.rel (0) target = $region61
    $region60: #{tpu_custom_call.1} parent=1 // pred_region
      %130 = dma.done [#allocation6], 1024
    $region61: #{tpu_custom_call.1} parent=1 // pred_fallthru
      _
    // Predicated region
    $region62: #{tpu_custom_call.1} parent=1 // pred_check
      _
    $region63: #{tpu_custom_call.1} parent=1 // pred_check_branch
      %132 = sbr.rel (0) target = $region65
    $region64: #{tpu_custom_call.1} parent=1 // pred_region
      %134 = dma.done [#allocation9], 1024
    $region65: #{tpu_custom_call.1} parent=1 // pred_fallthru
      _
    // Predicated region
    $region66: #{tpu_custom_call.1} parent=1 // pred_check
      _
    $region67: #{tpu_custom_call.1} parent=1 // pred_check_branch
      %136 = sbr.rel (0) target = $region69
    $region68: #{tpu_custom_call.1} parent=1 // pred_region
      %138 = dma.done [#allocation9], 2048
    $region69: #{tpu_custom_call.1} parent=1 // pred_fallthru
      _
    // Predicated region
    $region70: #{tpu_custom_call.1} parent=1 // pred_check
      _
    $region71: #{tpu_custom_call.1} parent=1 // pred_check_branch
      %140 = sbr.rel (0) target = $region73
    $region72: #{tpu_custom_call.1} parent=1 // pred_region
      %142 = dma.done [#allocation12], 1024
    $region73: #{tpu_custom_call.1} parent=1 // pred_fallthru
      _
    // Predicated region
    $region74: #{tpu_custom_call.1} parent=1 // pred_check
      _
    $region75: #{tpu_custom_call.1} parent=1 // pred_check_branch
      %144 = sbr.rel (0) target = $region77
    $region76: #{tpu_custom_call.1} parent=1 // pred_region
      %146 = dma.done [#allocation12], 1024
    $region77: #{tpu_custom_call.1} parent=1 // pred_fallthru
      _
    %v147 = vld [vmem:[#allocation2] sm:$0xf]
    %v148 = vld [vmem:[#allocation7] sm:$0xf]
    %v149 = vld [vmem:[#allocation7 + $0x4] sm:$0xf]
    %v150 = vld [vmem:[#allocation7 + $0x8] sm:$0xf]
    %v151 = vld [vmem:[#allocation7 + $0xc] sm:$0xf]
    %v152 = vld [vmem:[#allocation7 + $0x10] sm:$0xf]
    %v153 = vld [vmem:[#allocation7 + $0x14] sm:$0xf]
    %v154 = vld [vmem:[#allocation7 + $0x18] sm:$0xf]
    %v155 = vld [vmem:[#allocation7 + $0x1c] sm:$0xf]
    %v156 = vld [vmem:[#allocation7 + $0x20] sm:$0xf]
    %v157 = vld [vmem:[#allocation7 + $0x24] sm:$0xf]
    %v158 = vld [vmem:[#allocation7 + $0x28] sm:$0xf]
    %v159 = vld [vmem:[#allocation7 + $0x2c] sm:$0xf]
    %v160 = vld [vmem:[#allocation7 + $0x30] sm:$0xf]
    %v161 = vld [vmem:[#allocation7 + $0x34] sm:$0xf]
    %v162 = vld [vmem:[#allocation7 + $0x38] sm:$0xf]
    %v163 = vld [vmem:[#allocation7 + $0x3c] sm:$0xf]
    %v164 = vld [vmem:[%s3] sm:$0x1]
    %v166 = vperm.slane %v164, 0
    %v184 = vunpack.c.l.b16 %v148
    %v185 = vunpack.c.l.b16 %v149
    %v186 = vunpack.c.l.b16 %v150
    %v187 = vunpack.c.l.b16 %v151
    %v188 = vunpack.c.l.b16 %v152
    %v189 = vunpack.c.l.b16 %v153
    %v190 = vunpack.c.l.b16 %v154
    %v191 = vunpack.c.l.b16 %v155
    %v192 = vunpack.c.l.b16 %v156
    %v193 = vunpack.c.l.b16 %v157
    %v194 = vunpack.c.l.b16 %v158
    %v195 = vunpack.c.l.b16 %v159
    %v196 = vunpack.c.l.b16 %v160
    %v197 = vunpack.c.l.b16 %v161
    %v198 = vunpack.c.l.b16 %v162
    %v199 = vunpack.c.l.b16 %v163
    %v200 = vpack.c.b16 %v185, %v184
    %v201 = vpack.c.b16 %v187, %v186
    %v202 = vpack.c.b16 %v189, %v188
    %v203 = vpack.c.b16 %v191, %v190
    %v204 = vpack.c.b16 %v193, %v192
    %v205 = vpack.c.b16 %v195, %v194
    %v206 = vpack.c.b16 %v197, %v196
    %v207 = vpack.c.b16 %v199, %v198
    %216 = vmatpush.bf16.msra.mxu0 %v207
    %217 = vmatpush.bf16.msra.mxu0 %v206
    %218 = vmatpush.bf16.msra.mxu0 %v205
    %219 = vmatpush.bf16.msra.mxu0 %v204
    %220 = vmatpush.bf16.msra.mxu0 %v203
    %221 = vmatpush.bf16.msra.mxu0 %v202
    %222 = vmatpush.bf16.msra.mxu0 %v201
    %223 = vmatpush.bf16.msra.mxu0 %v200
    %224 = vmatmul.bf16.gmra.mxu0 %v147
    %v225 = vpop.f32.mrf.mxu0
    %v226 = vadd.f32 %v166, %v225
    %v227 = vpop.f32.mrf.mxu0
    %228 = vdwg.mxu0
    %v229 = vmul.f32 %v226, %v226
    %v230 = vmul.f32 %v226, %v229
    %v231 = vmul.f32 %v230, 0.044715
    %v232 = vadd.f32 %v226, %v231
    %v233 = vmul.f32 %v232, 0.7978846
    %v234 = vtanh.pop %v233
    %v235 = vadd.f32 %v234, 1.0
    %v236 = vmul.f32 %v235, 0.5
    %v237 = vmul.f32 %v226, %v236
    %v238 = vpack.c.bf16 %v237, %v237
    %v239 = vld [vmem:[#allocation8] sm:$0xf]
    %v240 = vld [vmem:[#allocation8 + $0x4] sm:$0xf]
    %v241 = vld [vmem:[#allocation8 + $0x8] sm:$0xf]
    %v242 = vld [vmem:[#allocation8 + $0xc] sm:$0xf]
    %v243 = vld [vmem:[#allocation8 + $0x10] sm:$0xf]
    %v244 = vld [vmem:[#allocation8 + $0x14] sm:$0xf]
    %v245 = vld [vmem:[#allocation8 + $0x18] sm:$0xf]
    %v246 = vld [vmem:[#allocation8 + $0x1c] sm:$0xf]
    %v247 = vld [vmem:[#allocation8 + $0x20] sm:$0xf]
    %v248 = vld [vmem:[#allocation8 + $0x24] sm:$0xf]
    %v249 = vld [vmem:[#allocation8 + $0x28] sm:$0xf]
    %v250 = vld [vmem:[#allocation8 + $0x2c] sm:$0xf]
    %v251 = vld [vmem:[#allocation8 + $0x30] sm:$0xf]
    %v252 = vld [vmem:[#allocation8 + $0x34] sm:$0xf]
    %v253 = vld [vmem:[#allocation8 + $0x38] sm:$0xf]
    %v254 = vld [vmem:[#allocation8 + $0x3c] sm:$0xf]
    %v255 = vld [vmem:[%s5] sm:$0x1]
    %v257 = vperm.slane %v255, 0
    %v275 = vunpack.c.l.b16 %v239
    %v276 = vunpack.c.l.b16 %v240
    %v277 = vunpack.c.l.b16 %v241
    %v278 = vunpack.c.l.b16 %v242
    %v279 = vunpack.c.l.b16 %v243
    %v280 = vunpack.c.l.b16 %v244
    %v281 = vunpack.c.l.b16 %v245
    %v282 = vunpack.c.l.b16 %v246
    %v283 = vunpack.c.l.b16 %v247
    %v284 = vunpack.c.l.b16 %v248
    %v285 = vunpack.c.l.b16 %v249
    %v286 = vunpack.c.l.b16 %v250
    %v287 = vunpack.c.l.b16 %v251
    %v288 = vunpack.c.l.b16 %v252
    %v289 = vunpack.c.l.b16 %v253
    %v290 = vunpack.c.l.b16 %v254
    %v291 = vpack.c.b16 %v276, %v275
    %v292 = vpack.c.b16 %v278, %v277
    %v293 = vpack.c.b16 %v280, %v279
    %v294 = vpack.c.b16 %v282, %v281
    %v295 = vpack.c.b16 %v284, %v283
    %v296 = vpack.c.b16 %v286, %v285
    %v297 = vpack.c.b16 %v288, %v287
    %v298 = vpack.c.b16 %v290, %v289
    %307 = vmatpush.bf16.msra.mxu0 %v298
    %308 = vmatpush.bf16.msra.mxu0 %v297
    %309 = vmatpush.bf16.msra.mxu0 %v296
    %310 = vmatpush.bf16.msra.mxu0 %v295
    %311 = vmatpush.bf16.msra.mxu0 %v294
    %312 = vmatpush.bf16.msra.mxu0 %v293
    %313 = vmatpush.bf16.msra.mxu0 %v292
    %314 = vmatpush.bf16.msra.mxu0 %v291
    %315 = vmatmul.bf16.gmra.mxu0 %v238
    %v316 = vpop.f32.mrf.mxu0
    %v317 = vadd.f32 %v257, %v316
    %v318 = vpop.f32.mrf.mxu0
    %319 = vdwg.mxu0
    %v320 = vld [vmem:[#allocation5] sm:$0xff]
    %v321 = vpack.c.bf16 %v320, %v320
    %v322 = vpack.c.bf16 %v317, %v317
    %v323 = vld [vmem:[#allocation10] sm:$0xf]
    %v324 = vld [vmem:[#allocation10 + $0x4] sm:$0xf]
    %v325 = vld [vmem:[#allocation10 + $0x8] sm:$0xf]
    %v326 = vld [vmem:[#allocation10 + $0xc] sm:$0xf]
    %v327 = vld [vmem:[#allocation10 + $0x10] sm:$0xf]
    %v328 = vld [vmem:[#allocation10 + $0x14] sm:$0xf]
    %v329 = vld [vmem:[#allocation10 + $0x18] sm:$0xf]
    %v330 = vld [vmem:[#allocation10 + $0x1c] sm:$0xf]
    %v331 = vld [vmem:[#allocation10 + $0x20] sm:$0xf]
    %v332 = vld [vmem:[#allocation10 + $0x24] sm:$0xf]
    %v333 = vld [vmem:[#allocation10 + $0x28] sm:$0xf]
    %v334 = vld [vmem:[#allocation10 + $0x2c] sm:$0xf]
    %v335 = vld [vmem:[#allocation10 + $0x30] sm:$0xf]
    %v336 = vld [vmem:[#allocation10 + $0x34] sm:$0xf]
    %v337 = vld [vmem:[#allocation10 + $0x38] sm:$0xf]
    %v338 = vld [vmem:[#allocation10 + $0x3c] sm:$0xf]
    %v339 = vld [vmem:[#allocation10 + $0x40] sm:$0xf]
    %v340 = vld [vmem:[#allocation10 + $0x44] sm:$0xf]
    %v341 = vld [vmem:[#allocation10 + $0x48] sm:$0xf]
    %v342 = vld [vmem:[#allocation10 + $0x4c] sm:$0xf]
    %v343 = vld [vmem:[#allocation10 + $0x50] sm:$0xf]
    %v344 = vld [vmem:[#allocation10 + $0x54] sm:$0xf]
    %v345 = vld [vmem:[#allocation10 + $0x58] sm:$0xf]
    %v346 = vld [vmem:[#allocation10 + $0x5c] sm:$0xf]
    %v347 = vld [vmem:[#allocation10 + $0x60] sm:$0xf]
    %v348 = vld [vmem:[#allocation10 + $0x64] sm:$0xf]
    %v349 = vld [vmem:[#allocation10 + $0x68] sm:$0xf]
    %v350 = vld [vmem:[#allocation10 + $0x6c] sm:$0xf]
    %v351 = vld [vmem:[#allocation10 + $0x70] sm:$0xf]
    %v352 = vld [vmem:[#allocation10 + $0x74] sm:$0xf]
    %v353 = vld [vmem:[#allocation10 + $0x78] sm:$0xf]
    %v354 = vld [vmem:[#allocation10 + $0x7c] sm:$0xf]
    %v355 = vld [vmem:[%s7] sm:$0x1]
    %v357 = vperm.slane %v355, 0
    %v391 = vunpack.c.l.b16 %v323
    %v392 = vunpack.c.l.b16 %v324
    %v393 = vunpack.c.l.b16 %v325
    %v394 = vunpack.c.l.b16 %v326
    %v395 = vunpack.c.l.b16 %v327
    %v396 = vunpack.c.l.b16 %v328
    %v397 = vunpack.c.l.b16 %v329
    %v398 = vunpack.c.l.b16 %v330
    %v399 = vunpack.c.l.b16 %v331
    %v400 = vunpack.c.l.b16 %v332
    %v401 = vunpack.c.l.b16 %v333
    %v402 = vunpack.c.l.b16 %v334
    %v403 = vunpack.c.l.b16 %v335
    %v404 = vunpack.c.l.b16 %v336
    %v405 = vunpack.c.l.b16 %v337
    %v406 = vunpack.c.l.b16 %v338
    %v407 = vunpack.c.l.b16 %v339
    %v408 = vunpack.c.l.b16 %v340
    %v409 = vunpack.c.l.b16 %v341
    %v410 = vunpack.c.l.b16 %v342
    %v411 = vunpack.c.l.b16 %v343
    %v412 = vunpack.c.l.b16 %v344
    %v413 = vunpack.c.l.b16 %v345
    %v414 = vunpack.c.l.b16 %v346
    %v415 = vunpack.c.l.b16 %v347
    %v416 = vunpack.c.l.b16 %v348
    %v417 = vunpack.c.l.b16 %v349
    %v418 = vunpack.c.l.b16 %v350
    %v419 = vunpack.c.l.b16 %v351
    %v420 = vunpack.c.l.b16 %v352
    %v421 = vunpack.c.l.b16 %v353
    %v422 = vunpack.c.l.b16 %v354
    %v423 = vpack.c.b16 %v392, %v391
    %v424 = vpack.c.b16 %v394, %v393
    %v425 = vpack.c.b16 %v396, %v395
    %v426 = vpack.c.b16 %v398, %v397
    %v427 = vpack.c.b16 %v400, %v399
    %v428 = vpack.c.b16 %v402, %v401
    %v429 = vpack.c.b16 %v404, %v403
    %v430 = vpack.c.b16 %v406, %v405
    %v431 = vpack.c.b16 %v408, %v407
    %v432 = vpack.c.b16 %v410, %v409
    %v433 = vpack.c.b16 %v412, %v411
    %v434 = vpack.c.b16 %v414, %v413
    %v435 = vpack.c.b16 %v416, %v415
    %v436 = vpack.c.b16 %v418, %v417
    %v437 = vpack.c.b16 %v420, %v419
    %v438 = vpack.c.b16 %v422, %v421
    %455 = vmatpush.bf16.msra.mxu0 %v430
    %456 = vmatpush.bf16.msra.mxu0 %v429
    %457 = vmatpush.bf16.msra.mxu0 %v428
    %458 = vmatpush.bf16.msra.mxu0 %v427
    %459 = vmatpush.bf16.msra.mxu0 %v426
    %460 = vmatpush.bf16.msra.mxu0 %v425
    %461 = vmatpush.bf16.msra.mxu0 %v424
    %462 = vmatpush.bf16.msra.mxu0 %v423
    %463 = vmatmul.bf16.gmra.mxu0 %v321
    %v464 = vpop.f32.mrf.mxu0
    %v465 = vadd.f32 %v357, %v464
    %v466 = vpop.f32.mrf.mxu0
    %467 = vdwg.mxu0
    %468 = vmatpush.bf16.msra.mxu0 %v438
    %469 = vmatpush.bf16.msra.mxu0 %v437
    %470 = vmatpush.bf16.msra.mxu0 %v436
    %471 = vmatpush.bf16.msra.mxu0 %v435
    %472 = vmatpush.bf16.msra.mxu0 %v434
    %473 = vmatpush.bf16.msra.mxu0 %v433
    %474 = vmatpush.bf16.msra.mxu0 %v432
    %475 = vmatpush.bf16.msra.mxu0 %v431
    %476 = vmatmul.bf16.gmra.mxu0 %v322
    %v477 = vpop.f32.mrf.mxu0
    %v478 = vadd.f32 %v465, %v477
    %v479 = vpop.f32.mrf.mxu0
    %480 = vdwg.mxu0
    %v481 = vmul.f32 %v478, %v478
    %v482 = vmul.f32 %v478, %v481
    %v483 = vmul.f32 %v482, 0.044715
    %v484 = vadd.f32 %v478, %v483
    %v485 = vmul.f32 %v484, 0.7978846
    %v486 = vtanh.pop %v485
    %v487 = vadd.f32 %v486, 1.0
    %v488 = vmul.f32 %v487, 0.5
    %v489 = vmul.f32 %v478, %v488
    %v490 = vpack.c.bf16 %v489, %v489
    %v491 = vld [vmem:[#allocation11] sm:$0xf]
    %v492 = vld [vmem:[#allocation11 + $0x4] sm:$0xf]
    %v493 = vld [vmem:[#allocation11 + $0x8] sm:$0xf]
    %v494 = vld [vmem:[#allocation11 + $0xc] sm:$0xf]
    %v495 = vld [vmem:[#allocation11 + $0x10] sm:$0xf]
    %v496 = vld [vmem:[#allocation11 + $0x14] sm:$0xf]
    %v497 = vld [vmem:[#allocation11 + $0x18] sm:$0xf]
    %v498 = vld [vmem:[#allocation11 + $0x1c] sm:$0xf]
    %v499 = vld [vmem:[#allocation11 + $0x20] sm:$0xf]
    %v500 = vld [vmem:[#allocation11 + $0x24] sm:$0xf]
    %v501 = vld [vmem:[#allocation11 + $0x28] sm:$0xf]
    %v502 = vld [vmem:[#allocation11 + $0x2c] sm:$0xf]
    %v503 = vld [vmem:[#allocation11 + $0x30] sm:$0xf]
    %v504 = vld [vmem:[#allocation11 + $0x34] sm:$0xf]
    %v505 = vld [vmem:[#allocation11 + $0x38] sm:$0xf]
    %v506 = vld [vmem:[#allocation11 + $0x3c] sm:$0xf]
    %v507 = vld [vmem:[%s9] sm:$0x1]
    %v509 = vperm.slane %v507, 0
    %v527 = vunpack.c.l.b16 %v491
    %v528 = vunpack.c.l.b16 %v492
    %v529 = vunpack.c.l.b16 %v493
    %v530 = vunpack.c.l.b16 %v494
    %v531 = vunpack.c.l.b16 %v495
    %v532 = vunpack.c.l.b16 %v496
    %v533 = vunpack.c.l.b16 %v497
    %v534 = vunpack.c.l.b16 %v498
    %v535 = vunpack.c.l.b16 %v499
    %v536 = vunpack.c.l.b16 %v500
    %v537 = vunpack.c.l.b16 %v501
    %v538 = vunpack.c.l.b16 %v502
    %v539 = vunpack.c.l.b16 %v503
    %v540 = vunpack.c.l.b16 %v504
    %v541 = vunpack.c.l.b16 %v505
    %v542 = vunpack.c.l.b16 %v506
    %v543 = vpack.c.b16 %v528, %v527
    %v544 = vpack.c.b16 %v530, %v529
    %v545 = vpack.c.b16 %v532, %v531
    %v546 = vpack.c.b16 %v534, %v533
    %v547 = vpack.c.b16 %v536, %v535
    %v548 = vpack.c.b16 %v538, %v537
    %v549 = vpack.c.b16 %v540, %v539
    %v550 = vpack.c.b16 %v542, %v541
    %559 = vmatpush.bf16.msra.mxu0 %v550
    %560 = vmatpush.bf16.msra.mxu0 %v549
    %561 = vmatpush.bf16.msra.mxu0 %v548
    %562 = vmatpush.bf16.msra.mxu0 %v547
    %563 = vmatpush.bf16.msra.mxu0 %v546
    %564 = vmatpush.bf16.msra.mxu0 %v545
    %565 = vmatpush.bf16.msra.mxu0 %v544
    %566 = vmatpush.bf16.msra.mxu0 %v543
    %567 = vmatmul.bf16.gmra.mxu0 %v490
    %v568 = vpop.f32.mrf.mxu0
    %v569 = vadd.f32 %v509, %v568
    %v570 = vpop.f32.mrf.mxu0
    %571 = vdwg.mxu0
    %v572 = vmul.f32 %v569, %v569
    %v573 = vmul.f32 %v569, %v572
    %v574 = vmul.f32 %v573, 0.044715
    %v575 = vadd.f32 %v569, %v574
    %v576 = vmul.f32 %v575, 0.7978846
    %v577 = vtanh.pop %v576
    %v578 = vadd.f32 %v577, 1.0
    %v579 = vmul.f32 %v578, 0.5
    %v580 = vmul.f32 %v569, %v579
    %v581 = vpack.c.bf16 %v580, %v580
    %v582 = vld [vmem:[#allocation13] sm:$0xf]
    %v583 = vld [vmem:[#allocation13 + $0x4] sm:$0xf]
    %v584 = vld [vmem:[#allocation13 + $0x8] sm:$0xf]
    %v585 = vld [vmem:[#allocation13 + $0xc] sm:$0xf]
    %v586 = vld [vmem:[#allocation13 + $0x10] sm:$0xf]
    %v587 = vld [vmem:[#allocation13 + $0x14] sm:$0xf]
    %v588 = vld [vmem:[#allocation13 + $0x18] sm:$0xf]
    %v589 = vld [vmem:[#allocation13 + $0x1c] sm:$0xf]
    %v590 = vld [vmem:[#allocation13 + $0x20] sm:$0xf]
    %v591 = vld [vmem:[#allocation13 + $0x24] sm:$0xf]
    %v592 = vld [vmem:[#allocation13 + $0x28] sm:$0xf]
    %v593 = vld [vmem:[#allocation13 + $0x2c] sm:$0xf]
    %v594 = vld [vmem:[#allocation13 + $0x30] sm:$0xf]
    %v595 = vld [vmem:[#allocation13 + $0x34] sm:$0xf]
    %v596 = vld [vmem:[#allocation13 + $0x38] sm:$0xf]
    %v597 = vld [vmem:[#allocation13 + $0x3c] sm:$0xf]
    %v598 = vld [vmem:[%s11] sm:$0x1]
    %v600 = vperm.slane %v598, 0
    %v618 = vunpack.c.l.b16 %v582
    %v619 = vunpack.c.l.b16 %v583
    %v620 = vunpack.c.l.b16 %v584
    %v621 = vunpack.c.l.b16 %v585
    %v622 = vunpack.c.l.b16 %v586
    %v623 = vunpack.c.l.b16 %v587
    %v624 = vunpack.c.l.b16 %v588
    %v625 = vunpack.c.l.b16 %v589
    %v626 = vunpack.c.l.b16 %v590
    %v627 = vunpack.c.l.b16 %v591
    %v628 = vunpack.c.l.b16 %v592
    %v629 = vunpack.c.l.b16 %v593
    %v630 = vunpack.c.l.b16 %v594
    %v631 = vunpack.c.l.b16 %v595
    %v632 = vunpack.c.l.b16 %v596
    %v633 = vunpack.c.l.b16 %v597
    %v634 = vpack.c.b16 %v619, %v618
    %v635 = vpack.c.b16 %v621, %v620
    %v636 = vpack.c.b16 %v623, %v622
    %v637 = vpack.c.b16 %v625, %v624
    %v638 = vpack.c.b16 %v627, %v626
    %v639 = vpack.c.b16 %v629, %v628
    %v640 = vpack.c.b16 %v631, %v630
    %v641 = vpack.c.b16 %v633, %v632
    %650 = vmatpush.bf16.msra.mxu0 %v641
    %651 = vmatpush.bf16.msra.mxu0 %v640
    %652 = vmatpush.bf16.msra.mxu0 %v639
    %653 = vmatpush.bf16.msra.mxu0 %v638
    %654 = vmatpush.bf16.msra.mxu0 %v637
    %655 = vmatpush.bf16.msra.mxu0 %v636
    %656 = vmatpush.bf16.msra.mxu0 %v635
    %657 = vmatpush.bf16.msra.mxu0 %v634
    %658 = vmatmul.bf16.gmra.mxu0 %v581
    %v659 = vpop.f32.mrf.mxu0
    %v660 = vadd.f32 %v600, %v659
    %v661 = vpop.f32.mrf.mxu0
    %662 = vdwg.mxu0
    %663 = vst [vmem:[#allocation14] sm:$0xff] %v660
    // Predicated region
    $region78: #{tpu_custom_call.1} parent=1 // pred_check
      _
    $region79: #{tpu_custom_call.1} parent=1 // pred_check_branch
      %665 = sbr.rel (0) target = $region81
    $region80: #{tpu_custom_call.1} parent=1 // pred_region
      %667 = vsyncadd [#allocation4], 0
      %s669 = sshll.u32 [#allocation14], 4
      %s670 = int_to_ptr.vmem [resolvable:$true] %s669
      %s671 = sshll.u32 %s12, 4
      %s672 = int_to_ptr.hbm [resolvable:$true] %s671
      %674 = dma.vmem_to_hbm [thread:$0]  %s670, 128, %s672, [#allocation4]
    $region81: #{tpu_custom_call.1} parent=1 // pred_fallthru
      _
    // Predicated region
    $region82: #{tpu_custom_call.1} parent=1 // pred_check
      _
    $region83: #{tpu_custom_call.1} parent=1 // pred_check_branch
      %676 = sbr.rel (0) target = $region85
    $region84: #{tpu_custom_call.1} parent=1 // pred_region
      %678 = dma.done [#allocation4], 128
    $region85: #{tpu_custom_call.1} parent=1 // pred_fallthru
      _
    %679 = vsyncpa [#allocation3], 1
    %680 = vsyncpa [#allocation6], 1
    %681 = vsyncpa [#allocation9], 1
    %682 = vsyncpa [#allocation12], 1
    %683 = vsyncpa [#allocation4], 1

</llo_original>
